<compile_context>
chip_gen: v6e
topology: v6e:2x2x1
jax: 0.10.0
libtpu: 0.0.40
codegen_flags: <defaults>
</compile_context>

<pallas_src>
import math

import jax
import jax.numpy as jnp
from jax.experimental import pallas as pl
from jax.experimental.pallas import tpu as pltpu


def decoder_kernel(tgt_ref, mem_ref, mem_t_ref, mask_ref, h0_ref, c0_ref,
                   w_ih_ref, w_hh_ref, b_ref, w_a_ref, w_oc_ref, w_oh_ref,
                   out_ref, attn_ref):
    BT, E = tgt_ref.shape
    B, S_pad, H = mem_ref.shape
    T = BT // B
    H_pad = out_ref.shape[1]            # 128-lane-dense output width
    f32 = jnp.float32
    bf16 = jnp.bfloat16

    x_flat = tgt_ref[...]               # (B*T, E)  bf16, b-major / t-minor rows
    mem = mem_ref[...]                  # (B, S_pad, H) bf16 (zero-padded past S)
    mem_t = mem_t_ref[...]              # (B, H, S_pad) bf16 (pre-transposed in wrapper)
    mask = mask_ref[...]                # (B, 1, S_pad) f32 additive mask (0 / -1e30)
    w_ih = w_ih_ref[...]                # (E, 4H) bf16, gate order [i|f|o|g]
    w_hh = w_hh_ref[...]                # (H, 4H) bf16, gate order [i|f|o|g]
    b = b_ref[...]                      # (1, 4H) f32  (= b_ih + b_hh, permuted)
    w_a = w_a_ref[...]                  # (H, H)  bf16
    w_oc = w_oc_ref[...]                # (H, H)  bf16  (ctx  -> out half of W_out)
    w_oh = w_oh_ref[...]                # (H, H)  bf16  (h    -> out half of W_out)

    # ---- input projection for all T steps in one MXU pass (hoisted out of loop) ----
    xg = jnp.dot(x_flat, w_ih, preferred_element_type=f32) + b   # (B*T, 4H) f32
    xg = xg.reshape(B, T, 4 * H)                                  # tile-exact reshape

    # ---- LSTM recurrence (gate columns pre-permuted to [i, f, o | g] in the wrapper) --
    h = h0_ref[...]                     # (B, H) f32
    c = c0_ref[...]                     # (B, H) f32
    hs = []
    # TODO(synk): at production T*H, write each per-step h to a VMEM scratch (one vst
    # per step) instead of holding them in vregs, and hold w_hh resident in the MXU via
    # pltpu.matmul_push_rhs / matmul_acc_lhs / matmul_pop (+ MRB accumulate on v7x).
    for t in range(T):                  # T static -> fully unrolled
        gates = xg[:, t, :] + jnp.dot(h.astype(bf16), w_hh,
                                      preferred_element_type=f32)   # (B, 4H) f32
        sg = jax.nn.sigmoid(gates[:, 0:3 * H])    # one EUP pass over [i|f|o]
        g_g = jnp.tanh(gates[:, 3 * H:4 * H])
        i_g = sg[:, 0:H]
        f_g = sg[:, H:2 * H]
        o_g = sg[:, 2 * H:3 * H]
        c = f_g * c + i_g * g_g                   # cell state stays f32
        h = o_g * jnp.tanh(c)
        hs.append(h)
    rnn_out = jnp.stack(hs, axis=1)               # (B, T, H) f32
    rnn_flat = rnn_out.reshape(B * T, H)          # b-major / t-minor rows

    # ---- half of the output projection that is independent of attention --------------
    out_h = jnp.dot(rnn_flat.astype(bf16), w_oh,
                    preferred_element_type=f32)               # (B*T, H) f32

    # ---- Global attention, attn_type="general": score(h_t,h_s) = (h_t W_a) . h_s -----
    wq = jnp.dot(rnn_flat.astype(bf16), w_a,
                 preferred_element_type=f32)                  # (B*T, H) f32
    wq = wq.reshape(B, T, H).astype(bf16)
    scores = jnp.einsum('btk,bks->bts', wq, mem_t,
                        preferred_element_type=f32)           # (B, T, S_pad) f32

    # additive length mask (also masks the S -> S_pad zero padding, since mem_len <= S)
    # TODO(synk): a zero-length source would yield a uniform (not zero) attention row.
    scores = scores + mask                                    # broadcast over T

    # masked softmax over S_pad (f32 stats, EUP reciprocal instead of VALU divide)
    m = jnp.max(scores, axis=-1, keepdims=True)
    p = jnp.exp(scores - m)
    denom = jnp.sum(p, axis=-1, keepdims=True)
    p = p * pl.reciprocal(denom, approx=True)                 # (B, T, S_pad)

    # context + remaining output projection: attn_h = tanh(ctx @ W_oc + h @ W_oh)
    ctx = jnp.einsum('bts,bsh->bth', p.astype(bf16), mem,
                     preferred_element_type=f32)              # (B, T, H) f32
    out_c = jnp.dot(ctx.reshape(B * T, H).astype(bf16), w_oc,
                    preferred_element_type=f32)               # (B*T, H) f32
    attn_h = jnp.tanh(out_c + out_h)                          # (B*T, H) f32

    # TODO(synk): dropout_rnn is a no-op here (eval semantics, p effectively 0).
    # lane-dense stores: pad decoder output to H_pad(=128) lanes, write full slabs
    if H_pad > H:
        attn_h = jnp.pad(attn_h, ((0, 0), (0, H_pad - H)))
    out_ref[...] = attn_h                                     # (B*T, H_pad)
    # TODO(synk): at production sizes emit attn as bf16 to halve writeback bytes.
    attn_ref[...] = p                                         # (B, T, S_pad) lane-dense


def _permute_gates(w):
    """PyTorch LSTM gate order [i|f|g|o] -> kernel order [i|f|o|g] along last axis."""
    i, f, g, o = jnp.split(w, 4, axis=-1)
    return jnp.concatenate([i, f, o, g], axis=-1)


def decoder_forward(tgt, memory_bank, memory_len, h0, c0, params):
    B, T, E = tgt.shape
    S = memory_bank.shape[1]
    H = h0.shape[1]
    S_pad = ((S + 127) // 128) * 128          # lane-dense scores / attention stores
    H_pad = max(((H + 127) // 128) * 128, 128)  # lane-dense decoder-output store
    bf16 = jnp.bfloat16
    f32 = jnp.float32

    mem_pad = jnp.pad(memory_bank, ((0, 0), (0, S_pad - S), (0, 0))).astype(bf16)
    mem_t = jnp.transpose(mem_pad, (0, 2, 1))  # (B, H, S_pad): transpose once in XLA

    # additive length mask precomputed in XLA: 0 for valid positions, -1e30 otherwise
    mask = jnp.where(
        jnp.arange(S_pad, dtype=jnp.int32)[None, :] < memory_len.astype(jnp.int32)[:, None],
        0.0, -1e30).astype(f32).reshape(B, 1, S_pad)

    w_ih = _permute_gates(params['w_ih']).astype(bf16)
    w_hh = _permute_gates(params['w_hh']).astype(bf16)
    b = _permute_gates(params['b'].reshape(1, -1)).astype(f32)
    w_oc = params['w_out'][:H].astype(bf16)   # ctx half of W_out
    w_oh = params['w_out'][H:].astype(bf16)   # hidden half of W_out

    vmem = lambda: pl.BlockSpec(memory_space=pltpu.MemorySpace.VMEM)

    # TODO(synk): at production sizes add a batch grid with
    # dimension_semantics=("parallel",) so v7x's two TensorCores split the batch,
    # per-core VMEM stays within 64 MiB, and mem/mem_t are not both materialized for
    # the whole batch; at B=2 a single invocation is faster.
    fn = pl.pallas_call(
        decoder_kernel,
        out_shape=(jax.ShapeDtypeStruct((B * T, H_pad), f32),
                   jax.ShapeDtypeStruct((B, T, S_pad), f32)),
        in_specs=[vmem() for _ in range(12)],
        out_specs=(vmem(), vmem()),
    )
    dec_pad, attn_pad = fn(
        tgt.reshape(B * T, E).astype(bf16),
        mem_pad,
        mem_t,
        mask,
        h0.astype(f32),
        c0.astype(f32),
        w_ih,
        w_hh,
        b,
        params['w_a'].astype(bf16),
        w_oc,
        w_oh,
    )
    dec_out = dec_pad[:, :H].reshape(B, T, H)
    attn = attn_pad[:, :, :S]
    return dec_out, {"std": attn}


def decoder_reference(tgt, mem, mem_len, h0, c0, p):
    """Pure-JAX f32 reference of the same forward pass (for correctness check)."""
    B, T, E = tgt.shape
    S = mem.shape[1]
    H = h0.shape[1]
    h, c = h0, c0
    outs = []
    for t in range(T):
        gates = tgt[:, t, :] @ p['w_ih'] + h @ p['w_hh'] + p['b']
        i_g = jax.nn.sigmoid(gates[:, :H])
        f_g = jax.nn.sigmoid(gates[:, H:2 * H])
        g_g = jnp.tanh(gates[:, 2 * H:3 * H])
        o_g = jax.nn.sigmoid(gates[:, 3 * H:4 * H])
        c = f_g * c + i_g * g_g
        h = o_g * jnp.tanh(c)
        outs.append(h)
    rnn_out = jnp.stack(outs, axis=1)
    wq = jnp.einsum('bth,hk->btk', rnn_out, p['w_a'])
    scores = jnp.einsum('btk,bsk->bts', wq, mem)
    valid = jnp.arange(S)[None, :] < mem_len[:, None]
    scores = jnp.where(valid[:, None, :], scores, -1e30)
    attn = jax.nn.softmax(scores, axis=-1)
    ctx = jnp.einsum('bts,bsh->bth', attn, mem)
    out = jnp.tanh(ctx @ p['w_out'][:H] + rnn_out @ p['w_out'][H:])
    return out, attn


if __name__ == "__main__":
    key = jax.random.PRNGKey(0)
    # config: rnn_type='LSTM', bidirection=False, nlayers=1, nhid=32,
    #         attn_type='general', dropout_rnn=0.0, copy_attn=False, reuse_copy_attn=False
    B, T, S, E, H = 2, 8, 10, 32, 32
    ks = jax.random.split(key, 10)
    k = 1.0 / math.sqrt(H)

    tgt = jax.random.normal(ks[0], (B, T, E), jnp.float32)
    memory_bank = jax.random.normal(ks[1], (B, S, H), jnp.float32)
    memory_len = jnp.array([10, 7], jnp.int32)
    h0 = 0.1 * jax.random.normal(ks[2], (B, H), jnp.float32)
    c0 = 0.1 * jax.random.normal(ks[3], (B, H), jnp.float32)

    params = dict(
        w_ih=jax.random.uniform(ks[4], (E, 4 * H), jnp.float32, -k, k),
        w_hh=jax.random.uniform(ks[5], (H, 4 * H), jnp.float32, -k, k),
        b=jax.random.uniform(ks[6], (4 * H,), jnp.float32, -k, k),
        w_a=jax.random.uniform(ks[7], (H, H), jnp.float32, -k, k),
        w_out=jax.random.uniform(ks[8], (2 * H, H), jnp.float32, -k, k),
    )

    dec_out, attns = decoder_forward(tgt, memory_bank, memory_len, h0, c0, params)
    jax.block_until_ready((dec_out, attns["std"]))

    ref_out, ref_attn = decoder_reference(tgt, memory_bank, memory_len, h0, c0, params)
    assert dec_out.shape == (B, T, H) and attns["std"].shape == (B, T, S)
    assert jnp.allclose(dec_out, ref_out, atol=2e-2, rtol=2e-2)
    assert jnp.allclose(attns["std"], ref_attn, atol=2e-2, rtol=2e-2)

    print("KERNEL_OK")
</pallas_src>

<mosaic_0001>
module attributes {stable_mosaic.version = 11 : i64} {
  func.func @decoder_kernel(%arg0: memref<16x32xbf16, #tpu.memory_space<vmem>>, %arg1: memref<2x128x32xbf16, #tpu.memory_space<vmem>>, %arg2: memref<2x32x128xbf16, #tpu.memory_space<vmem>>, %arg3: memref<2x1x128xf32, #tpu.memory_space<vmem>>, %arg4: memref<2x32xf32, #tpu.memory_space<vmem>>, %arg5: memref<2x32xf32, #tpu.memory_space<vmem>>, %arg6: memref<32x128xbf16, #tpu.memory_space<vmem>>, %arg7: memref<32x128xbf16, #tpu.memory_space<vmem>>, %arg8: memref<1x128xf32, #tpu.memory_space<vmem>>, %arg9: memref<32x32xbf16, #tpu.memory_space<vmem>>, %arg10: memref<32x32xbf16, #tpu.memory_space<vmem>>, %arg11: memref<32x32xbf16, #tpu.memory_space<vmem>>, %arg12: memref<16x128xf32, #tpu.memory_space<vmem>>, %arg13: memref<2x8x128xf32, #tpu.memory_space<vmem>>) attributes {dimension_semantics = [], scalar_prefetch = 0 : i64, scratch_operands = 0 : i64, tpu.core_type = #tpu.core_type<tc>} {
    %c0 = arith.constant 0 : index
    %c0_0 = arith.constant 0 : index
    %0 = vector.load %arg0[%c0, %c0_0] : memref<16x32xbf16, #tpu.memory_space<vmem>>, vector<16x32xbf16>
    %c0_1 = arith.constant 0 : index
    %c0_2 = arith.constant 0 : index
    %c0_3 = arith.constant 0 : index
    %1 = vector.load %arg1[%c0_1, %c0_2, %c0_3] : memref<2x128x32xbf16, #tpu.memory_space<vmem>>, vector<2x128x32xbf16>
    %c0_4 = arith.constant 0 : index
    %c0_5 = arith.constant 0 : index
    %c0_6 = arith.constant 0 : index
    %2 = vector.load %arg2[%c0_4, %c0_5, %c0_6] : memref<2x32x128xbf16, #tpu.memory_space<vmem>>, vector<2x32x128xbf16>
    %c0_7 = arith.constant 0 : index
    %c0_8 = arith.constant 0 : index
    %c0_9 = arith.constant 0 : index
    %3 = vector.load %arg3[%c0_7, %c0_8, %c0_9] : memref<2x1x128xf32, #tpu.memory_space<vmem>>, vector<2x1x128xf32>
    %c0_10 = arith.constant 0 : index
    %c0_11 = arith.constant 0 : index
    %4 = vector.load %arg6[%c0_10, %c0_11] : memref<32x128xbf16, #tpu.memory_space<vmem>>, vector<32x128xbf16>
    %c0_12 = arith.constant 0 : index
    %c0_13 = arith.constant 0 : index
    %5 = vector.load %arg7[%c0_12, %c0_13] : memref<32x128xbf16, #tpu.memory_space<vmem>>, vector<32x128xbf16>
    %c0_14 = arith.constant 0 : index
    %c0_15 = arith.constant 0 : index
    %6 = vector.load %arg8[%c0_14, %c0_15] : memref<1x128xf32, #tpu.memory_space<vmem>>, vector<1x128xf32>
    %c0_16 = arith.constant 0 : index
    %c0_17 = arith.constant 0 : index
    %7 = vector.load %arg9[%c0_16, %c0_17] : memref<32x32xbf16, #tpu.memory_space<vmem>>, vector<32x32xbf16>
    %c0_18 = arith.constant 0 : index
    %c0_19 = arith.constant 0 : index
    %8 = vector.load %arg10[%c0_18, %c0_19] : memref<32x32xbf16, #tpu.memory_space<vmem>>, vector<32x32xbf16>
    %c0_20 = arith.constant 0 : index
    %c0_21 = arith.constant 0 : index
    %9 = vector.load %arg11[%c0_20, %c0_21] : memref<32x32xbf16, #tpu.memory_space<vmem>>, vector<32x32xbf16>
    %cst = arith.constant dense<0.000000e+00> : vector<16x128xf32>
    %10 = tpu.matmul %0, %4, %cst {dimension_numbers = #tpu.dot_dimension_numbers<[1], [0], [0], [1], [0, 0, 1, 1], [], []>} : vector<16x32xbf16>, vector<32x128xbf16>, vector<16x128xf32> -> vector<16x128xf32>
    %11 = vector.broadcast %6 : vector<1x128xf32> to vector<16x128xf32>
    %12 = arith.addf %10, %11 : vector<16x128xf32>
    %13 = vector.shape_cast %12 : vector<16x128xf32> to vector<2x8x128xf32>
    %c0_22 = arith.constant 0 : index
    %c0_23 = arith.constant 0 : index
    %14 = vector.load %arg4[%c0_22, %c0_23] : memref<2x32xf32, #tpu.memory_space<vmem>>, vector<2x32xf32>
    %c0_24 = arith.constant 0 : index
    %c0_25 = arith.constant 0 : index
    %15 = vector.load %arg5[%c0_24, %c0_25] : memref<2x32xf32, #tpu.memory_space<vmem>>, vector<2x32xf32>
    %16 = vector.extract_strided_slice %13 {offsets = [0, 0, 0], sizes = [2, 1, 128], strides = [1, 1, 1]} : vector<2x8x128xf32> to vector<2x1x128xf32>
    %17 = vector.shape_cast %16 : vector<2x1x128xf32> to vector<2x128xf32>
    %18 = arith.truncf %14 : vector<2x32xf32> to vector<2x32xbf16>
    %cst_26 = arith.constant dense<0.000000e+00> : vector<2x128xf32>
    %19 = tpu.matmul %18, %5, %cst_26 {dimension_numbers = #tpu.dot_dimension_numbers<[1], [0], [0], [1], [0, 0, 1, 1], [], []>} : vector<2x32xbf16>, vector<32x128xbf16>, vector<2x128xf32> -> vector<2x128xf32>
    %20 = arith.addf %17, %19 : vector<2x128xf32>
    %21 = vector.extract_strided_slice %20 {offsets = [0, 0], sizes = [2, 96], strides = [1, 1]} : vector<2x128xf32> to vector<2x96xf32>
    %22 = arith.negf %21 : vector<2x96xf32>
    %23 = math.exp %22 : vector<2x96xf32>
    %cst_27 = arith.constant 1.000000e+00 : f32
    %24 = vector.broadcast %cst_27 : f32 to vector<2x96xf32>
    %25 = arith.addf %24, %23 : vector<2x96xf32>
    %26 = arith.divf %24, %25 : vector<2x96xf32>
    %27 = vector.extract_strided_slice %20 {offsets = [0, 96], sizes = [2, 32], strides = [1, 1]} : vector<2x128xf32> to vector<2x32xf32>
    %28 = math.tanh %27 : vector<2x32xf32>
    %29 = vector.extract_strided_slice %26 {offsets = [0, 0], sizes = [2, 32], strides = [1, 1]} : vector<2x96xf32> to vector<2x32xf32>
    %30 = vector.extract_strided_slice %26 {offsets = [0, 32], sizes = [2, 32], strides = [1, 1]} : vector<2x96xf32> to vector<2x32xf32>
    %31 = vector.extract_strided_slice %26 {offsets = [0, 64], sizes = [2, 32], strides = [1, 1]} : vector<2x96xf32> to vector<2x32xf32>
    %32 = arith.mulf %30, %15 : vector<2x32xf32>
    %33 = arith.mulf %29, %28 : vector<2x32xf32>
    %34 = arith.addf %32, %33 : vector<2x32xf32>
    %35 = math.tanh %34 : vector<2x32xf32>
    %36 = arith.mulf %31, %35 : vector<2x32xf32>
    %37 = vector.extract_strided_slice %13 {offsets = [0, 1, 0], sizes = [2, 1, 128], strides = [1, 1, 1]} : vector<2x8x128xf32> to vector<2x1x128xf32>
    %38 = vector.shape_cast %37 : vector<2x1x128xf32> to vector<2x128xf32>
    %39 = arith.truncf %36 : vector<2x32xf32> to vector<2x32xbf16>
    %cst_28 = arith.constant dense<0.000000e+00> : vector<2x128xf32>
    %40 = tpu.matmul %39, %5, %cst_28 {dimension_numbers = #tpu.dot_dimension_numbers<[1], [0], [0], [1], [0, 0, 1, 1], [], []>} : vector<2x32xbf16>, vector<32x128xbf16>, vector<2x128xf32> -> vector<2x128xf32>
    %41 = arith.addf %38, %40 : vector<2x128xf32>
    %42 = vector.extract_strided_slice %41 {offsets = [0, 0], sizes = [2, 96], strides = [1, 1]} : vector<2x128xf32> to vector<2x96xf32>
    %43 = arith.negf %42 : vector<2x96xf32>
    %44 = math.exp %43 : vector<2x96xf32>
    %cst_29 = arith.constant 1.000000e+00 : f32
    %45 = vector.broadcast %cst_29 : f32 to vector<2x96xf32>
    %46 = arith.addf %45, %44 : vector<2x96xf32>
    %47 = arith.divf %45, %46 : vector<2x96xf32>
    %48 = vector.extract_strided_slice %41 {offsets = [0, 96], sizes = [2, 32], strides = [1, 1]} : vector<2x128xf32> to vector<2x32xf32>
    %49 = math.tanh %48 : vector<2x32xf32>
    %50 = vector.extract_strided_slice %47 {offsets = [0, 0], sizes = [2, 32], strides = [1, 1]} : vector<2x96xf32> to vector<2x32xf32>
    %51 = vector.extract_strided_slice %47 {offsets = [0, 32], sizes = [2, 32], strides = [1, 1]} : vector<2x96xf32> to vector<2x32xf32>
    %52 = vector.extract_strided_slice %47 {offsets = [0, 64], sizes = [2, 32], strides = [1, 1]} : vector<2x96xf32> to vector<2x32xf32>
    %53 = arith.mulf %51, %34 : vector<2x32xf32>
    %54 = arith.mulf %50, %49 : vector<2x32xf32>
    %55 = arith.addf %53, %54 : vector<2x32xf32>
    %56 = math.tanh %55 : vector<2x32xf32>
    %57 = arith.mulf %52, %56 : vector<2x32xf32>
    %58 = vector.extract_strided_slice %13 {offsets = [0, 2, 0], sizes = [2, 1, 128], strides = [1, 1, 1]} : vector<2x8x128xf32> to vector<2x1x128xf32>
    %59 = vector.shape_cast %58 : vector<2x1x128xf32> to vector<2x128xf32>
    %60 = arith.truncf %57 : vector<2x32xf32> to vector<2x32xbf16>
    %cst_30 = arith.constant dense<0.000000e+00> : vector<2x128xf32>
    %61 = tpu.matmul %60, %5, %cst_30 {dimension_numbers = #tpu.dot_dimension_numbers<[1], [0], [0], [1], [0, 0, 1, 1], [], []>} : vector<2x32xbf16>, vector<32x128xbf16>, vector<2x128xf32> -> vector<2x128xf32>
    %62 = arith.addf %59, %61 : vector<2x128xf32>
    %63 = vector.extract_strided_slice %62 {offsets = [0, 0], sizes = [2, 96], strides = [1, 1]} : vector<2x128xf32> to vector<2x96xf32>
    %64 = arith.negf %63 : vector<2x96xf32>
    %65 = math.exp %64 : vector<2x96xf32>
    %cst_31 = arith.constant 1.000000e+00 : f32
    %66 = vector.broadcast %cst_31 : f32 to vector<2x96xf32>
    %67 = arith.addf %66, %65 : vector<2x96xf32>
    %68 = arith.divf %66, %67 : vector<2x96xf32>
    %69 = vector.extract_strided_slice %62 {offsets = [0, 96], sizes = [2, 32], strides = [1, 1]} : vector<2x128xf32> to vector<2x32xf32>
    %70 = math.tanh %69 : vector<2x32xf32>
    %71 = vector.extract_strided_slice %68 {offsets = [0, 0], sizes = [2, 32], strides = [1, 1]} : vector<2x96xf32> to vector<2x32xf32>
    %72 = vector.extract_strided_slice %68 {offsets = [0, 32], sizes = [2, 32], strides = [1, 1]} : vector<2x96xf32> to vector<2x32xf32>
    %73 = vector.extract_strided_slice %68 {offsets = [0, 64], sizes = [2, 32], strides = [1, 1]} : vector<2x96xf32> to vector<2x32xf32>
    %74 = arith.mulf %72, %55 : vector<2x32xf32>
    %75 = arith.mulf %71, %70 : vector<2x32xf32>
    %76 = arith.addf %74, %75 : vector<2x32xf32>
    %77 = math.tanh %76 : vector<2x32xf32>
    %78 = arith.mulf %73, %77 : vector<2x32xf32>
    %79 = vector.extract_strided_slice %13 {offsets = [0, 3, 0], sizes = [2, 1, 128], strides = [1, 1, 1]} : vector<2x8x128xf32> to vector<2x1x128xf32>
    %80 = vector.shape_cast %79 : vector<2x1x128xf32> to vector<2x128xf32>
    %81 = arith.truncf %78 : vector<2x32xf32> to vector<2x32xbf16>
    %cst_32 = arith.constant dense<0.000000e+00> : vector<2x128xf32>
    %82 = tpu.matmul %81, %5, %cst_32 {dimension_numbers = #tpu.dot_dimension_numbers<[1], [0], [0], [1], [0, 0, 1, 1], [], []>} : vector<2x32xbf16>, vector<32x128xbf16>, vector<2x128xf32> -> vector<2x128xf32>
    %83 = arith.addf %80, %82 : vector<2x128xf32>
    %84 = vector.extract_strided_slice %83 {offsets = [0, 0], sizes = [2, 96], strides = [1, 1]} : vector<2x128xf32> to vector<2x96xf32>
    %85 = arith.negf %84 : vector<2x96xf32>
    %86 = math.exp %85 : vector<2x96xf32>
    %cst_33 = arith.constant 1.000000e+00 : f32
    %87 = vector.broadcast %cst_33 : f32 to vector<2x96xf32>
    %88 = arith.addf %87, %86 : vector<2x96xf32>
    %89 = arith.divf %87, %88 : vector<2x96xf32>
    %90 = vector.extract_strided_slice %83 {offsets = [0, 96], sizes = [2, 32], strides = [1, 1]} : vector<2x128xf32> to vector<2x32xf32>
    %91 = math.tanh %90 : vector<2x32xf32>
    %92 = vector.extract_strided_slice %89 {offsets = [0, 0], sizes = [2, 32], strides = [1, 1]} : vector<2x96xf32> to vector<2x32xf32>
    %93 = vector.extract_strided_slice %89 {offsets = [0, 32], sizes = [2, 32], strides = [1, 1]} : vector<2x96xf32> to vector<2x32xf32>
    %94 = vector.extract_strided_slice %89 {offsets = [0, 64], sizes = [2, 32], strides = [1, 1]} : vector<2x96xf32> to vector<2x32xf32>
    %95 = arith.mulf %93, %76 : vector<2x32xf32>
    %96 = arith.mulf %92, %91 : vector<2x32xf32>
    %97 = arith.addf %95, %96 : vector<2x32xf32>
    %98 = math.tanh %97 : vector<2x32xf32>
    %99 = arith.mulf %94, %98 : vector<2x32xf32>
    %100 = vector.extract_strided_slice %13 {offsets = [0, 4, 0], sizes = [2, 1, 128], strides = [1, 1, 1]} : vector<2x8x128xf32> to vector<2x1x128xf32>
    %101 = vector.shape_cast %100 : vector<2x1x128xf32> to vector<2x128xf32>
    %102 = arith.truncf %99 : vector<2x32xf32> to vector<2x32xbf16>
    %cst_34 = arith.constant dense<0.000000e+00> : vector<2x128xf32>
    %103 = tpu.matmul %102, %5, %cst_34 {dimension_numbers = #tpu.dot_dimension_numbers<[1], [0], [0], [1], [0, 0, 1, 1], [], []>} : vector<2x32xbf16>, vector<32x128xbf16>, vector<2x128xf32> -> vector<2x128xf32>
    %104 = arith.addf %101, %103 : vector<2x128xf32>
    %105 = vector.extract_strided_slice %104 {offsets = [0, 0], sizes = [2, 96], strides = [1, 1]} : vector<2x128xf32> to vector<2x96xf32>
    %106 = arith.negf %105 : vector<2x96xf32>
    %107 = math.exp %106 : vector<2x96xf32>
    %cst_35 = arith.constant 1.000000e+00 : f32
    %108 = vector.broadcast %cst_35 : f32 to vector<2x96xf32>
    %109 = arith.addf %108, %107 : vector<2x96xf32>
    %110 = arith.divf %108, %109 : vector<2x96xf32>
    %111 = vector.extract_strided_slice %104 {offsets = [0, 96], sizes = [2, 32], strides = [1, 1]} : vector<2x128xf32> to vector<2x32xf32>
    %112 = math.tanh %111 : vector<2x32xf32>
    %113 = vector.extract_strided_slice %110 {offsets = [0, 0], sizes = [2, 32], strides = [1, 1]} : vector<2x96xf32> to vector<2x32xf32>
    %114 = vector.extract_strided_slice %110 {offsets = [0, 32], sizes = [2, 32], strides = [1, 1]} : vector<2x96xf32> to vector<2x32xf32>
    %115 = vector.extract_strided_slice %110 {offsets = [0, 64], sizes = [2, 32], strides = [1, 1]} : vector<2x96xf32> to vector<2x32xf32>
    %116 = arith.mulf %114, %97 : vector<2x32xf32>
    %117 = arith.mulf %113, %112 : vector<2x32xf32>
    %118 = arith.addf %116, %117 : vector<2x32xf32>
    %119 = math.tanh %118 : vector<2x32xf32>
    %120 = arith.mulf %115, %119 : vector<2x32xf32>
    %121 = vector.extract_strided_slice %13 {offsets = [0, 5, 0], sizes = [2, 1, 128], strides = [1, 1, 1]} : vector<2x8x128xf32> to vector<2x1x128xf32>
    %122 = vector.shape_cast %121 : vector<2x1x128xf32> to vector<2x128xf32>
    %123 = arith.truncf %120 : vector<2x32xf32> to vector<2x32xbf16>
    %cst_36 = arith.constant dense<0.000000e+00> : vector<2x128xf32>
    %124 = tpu.matmul %123, %5, %cst_36 {dimension_numbers = #tpu.dot_dimension_numbers<[1], [0], [0], [1], [0, 0, 1, 1], [], []>} : vector<2x32xbf16>, vector<32x128xbf16>, vector<2x128xf32> -> vector<2x128xf32>
    %125 = arith.addf %122, %124 : vector<2x128xf32>
    %126 = vector.extract_strided_slice %125 {offsets = [0, 0], sizes = [2, 96], strides = [1, 1]} : vector<2x128xf32> to vector<2x96xf32>
    %127 = arith.negf %126 : vector<2x96xf32>
    %128 = math.exp %127 : vector<2x96xf32>
    %cst_37 = arith.constant 1.000000e+00 : f32
    %129 = vector.broadcast %cst_37 : f32 to vector<2x96xf32>
    %130 = arith.addf %129, %128 : vector<2x96xf32>
    %131 = arith.divf %129, %130 : vector<2x96xf32>
    %132 = vector.extract_strided_slice %125 {offsets = [0, 96], sizes = [2, 32], strides = [1, 1]} : vector<2x128xf32> to vector<2x32xf32>
    %133 = math.tanh %132 : vector<2x32xf32>
    %134 = vector.extract_strided_slice %131 {offsets = [0, 0], sizes = [2, 32], strides = [1, 1]} : vector<2x96xf32> to vector<2x32xf32>
    %135 = vector.extract_strided_slice %131 {offsets = [0, 32], sizes = [2, 32], strides = [1, 1]} : vector<2x96xf32> to vector<2x32xf32>
    %136 = vector.extract_strided_slice %131 {offsets = [0, 64], sizes = [2, 32], strides = [1, 1]} : vector<2x96xf32> to vector<2x32xf32>
    %137 = arith.mulf %135, %118 : vector<2x32xf32>
    %138 = arith.mulf %134, %133 : vector<2x32xf32>
    %139 = arith.addf %137, %138 : vector<2x32xf32>
    %140 = math.tanh %139 : vector<2x32xf32>
    %141 = arith.mulf %136, %140 : vector<2x32xf32>
    %142 = vector.extract_strided_slice %13 {offsets = [0, 6, 0], sizes = [2, 1, 128], strides = [1, 1, 1]} : vector<2x8x128xf32> to vector<2x1x128xf32>
    %143 = vector.shape_cast %142 : vector<2x1x128xf32> to vector<2x128xf32>
    %144 = arith.truncf %141 : vector<2x32xf32> to vector<2x32xbf16>
    %cst_38 = arith.constant dense<0.000000e+00> : vector<2x128xf32>
    %145 = tpu.matmul %144, %5, %cst_38 {dimension_numbers = #tpu.dot_dimension_numbers<[1], [0], [0], [1], [0, 0, 1, 1], [], []>} : vector<2x32xbf16>, vector<32x128xbf16>, vector<2x128xf32> -> vector<2x128xf32>
    %146 = arith.addf %143, %145 : vector<2x128xf32>
    %147 = vector.extract_strided_slice %146 {offsets = [0, 0], sizes = [2, 96], strides = [1, 1]} : vector<2x128xf32> to vector<2x96xf32>
    %148 = arith.negf %147 : vector<2x96xf32>
    %149 = math.exp %148 : vector<2x96xf32>
    %cst_39 = arith.constant 1.000000e+00 : f32
    %150 = vector.broadcast %cst_39 : f32 to vector<2x96xf32>
    %151 = arith.addf %150, %149 : vector<2x96xf32>
    %152 = arith.divf %150, %151 : vector<2x96xf32>
    %153 = vector.extract_strided_slice %146 {offsets = [0, 96], sizes = [2, 32], strides = [1, 1]} : vector<2x128xf32> to vector<2x32xf32>
    %154 = math.tanh %153 : vector<2x32xf32>
    %155 = vector.extract_strided_slice %152 {offsets = [0, 0], sizes = [2, 32], strides = [1, 1]} : vector<2x96xf32> to vector<2x32xf32>
    %156 = vector.extract_strided_slice %152 {offsets = [0, 32], sizes = [2, 32], strides = [1, 1]} : vector<2x96xf32> to vector<2x32xf32>
    %157 = vector.extract_strided_slice %152 {offsets = [0, 64], sizes = [2, 32], strides = [1, 1]} : vector<2x96xf32> to vector<2x32xf32>
    %158 = arith.mulf %156, %139 : vector<2x32xf32>
    %159 = arith.mulf %155, %154 : vector<2x32xf32>
    %160 = arith.addf %158, %159 : vector<2x32xf32>
    %161 = math.tanh %160 : vector<2x32xf32>
    %162 = arith.mulf %157, %161 : vector<2x32xf32>
    %163 = vector.extract_strided_slice %13 {offsets = [0, 7, 0], sizes = [2, 1, 128], strides = [1, 1, 1]} : vector<2x8x128xf32> to vector<2x1x128xf32>
    %164 = vector.shape_cast %163 : vector<2x1x128xf32> to vector<2x128xf32>
    %165 = arith.truncf %162 : vector<2x32xf32> to vector<2x32xbf16>
    %cst_40 = arith.constant dense<0.000000e+00> : vector<2x128xf32>
    %166 = tpu.matmul %165, %5, %cst_40 {dimension_numbers = #tpu.dot_dimension_numbers<[1], [0], [0], [1], [0, 0, 1, 1], [], []>} : vector<2x32xbf16>, vector<32x128xbf16>, vector<2x128xf32> -> vector<2x128xf32>
    %167 = arith.addf %164, %166 : vector<2x128xf32>
    %168 = vector.extract_strided_slice %167 {offsets = [0, 0], sizes = [2, 96], strides = [1, 1]} : vector<2x128xf32> to vector<2x96xf32>
    %169 = arith.negf %168 : vector<2x96xf32>
    %170 = math.exp %169 : vector<2x96xf32>
    %cst_41 = arith.constant 1.000000e+00 : f32
    %171 = vector.broadcast %cst_41 : f32 to vector<2x96xf32>
    %172 = arith.addf %171, %170 : vector<2x96xf32>
    %173 = arith.divf %171, %172 : vector<2x96xf32>
    %174 = vector.extract_strided_slice %167 {offsets = [0, 96], sizes = [2, 32], strides = [1, 1]} : vector<2x128xf32> to vector<2x32xf32>
    %175 = math.tanh %174 : vector<2x32xf32>
    %176 = vector.extract_strided_slice %173 {offsets = [0, 0], sizes = [2, 32], strides = [1, 1]} : vector<2x96xf32> to vector<2x32xf32>
    %177 = vector.extract_strided_slice %173 {offsets = [0, 32], sizes = [2, 32], strides = [1, 1]} : vector<2x96xf32> to vector<2x32xf32>
    %178 = vector.extract_strided_slice %173 {offsets = [0, 64], sizes = [2, 32], strides = [1, 1]} : vector<2x96xf32> to vector<2x32xf32>
    %179 = arith.mulf %177, %160 : vector<2x32xf32>
    %180 = arith.mulf %176, %175 : vector<2x32xf32>
    %181 = arith.addf %179, %180 : vector<2x32xf32>
    %182 = math.tanh %181 : vector<2x32xf32>
    %183 = arith.mulf %178, %182 : vector<2x32xf32>
    %184 = vector.shape_cast %36 : vector<2x32xf32> to vector<2x1x32xf32>
    %185 = vector.shape_cast %57 : vector<2x32xf32> to vector<2x1x32xf32>
    %186 = vector.shape_cast %78 : vector<2x32xf32> to vector<2x1x32xf32>
    %187 = vector.shape_cast %99 : vector<2x32xf32> to vector<2x1x32xf32>
    %188 = vector.shape_cast %120 : vector<2x32xf32> to vector<2x1x32xf32>
    %189 = vector.shape_cast %141 : vector<2x32xf32> to vector<2x1x32xf32>
    %190 = vector.shape_cast %162 : vector<2x32xf32> to vector<2x1x32xf32>
    %191 = vector.shape_cast %183 : vector<2x32xf32> to vector<2x1x32xf32>
    %192 = tpu.concatenate %184, %185, %186, %187, %188, %189, %190, %191 in 1 : vector<2x1x32xf32>, vector<2x1x32xf32>, vector<2x1x32xf32>, vector<2x1x32xf32>, vector<2x1x32xf32>, vector<2x1x32xf32>, vector<2x1x32xf32>, vector<2x1x32xf32> -> vector<2x8x32xf32>
    %193 = vector.shape_cast %192 : vector<2x8x32xf32> to vector<16x32xf32>
    %194 = arith.truncf %193 : vector<16x32xf32> to vector<16x32xbf16>
    %cst_42 = arith.constant dense<0.000000e+00> : vector<16x32xf32>
    %195 = tpu.matmul %194, %9, %cst_42 {dimension_numbers = #tpu.dot_dimension_numbers<[1], [0], [0], [1], [0, 0, 1, 1], [], []>} : vector<16x32xbf16>, vector<32x32xbf16>, vector<16x32xf32> -> vector<16x32xf32>
    %196 = arith.truncf %193 : vector<16x32xf32> to vector<16x32xbf16>
    %cst_43 = arith.constant dense<0.000000e+00> : vector<16x32xf32>
    %197 = tpu.matmul %196, %7, %cst_43 {dimension_numbers = #tpu.dot_dimension_numbers<[1], [0], [0], [1], [0, 0, 1, 1], [], []>} : vector<16x32xbf16>, vector<32x32xbf16>, vector<16x32xf32> -> vector<16x32xf32>
    %198 = vector.shape_cast %197 : vector<16x32xf32> to vector<2x8x32xf32>
    %199 = arith.truncf %198 : vector<2x8x32xf32> to vector<2x8x32xbf16>
    "tpu.trace_start"() <{level = 10 : i32, message = "btk,bks->bts"}> : () -> ()
    %cst_44 = arith.constant dense<0.000000e+00> : vector<2x8x128xf32>
    %200 = tpu.matmul %199, %2, %cst_44 {dimension_numbers = #tpu.dot_dimension_numbers<[2], [1], [1], [2], [0, 0, 0, 1, 1, 2], [0], [0]>} : vector<2x8x32xbf16>, vector<2x32x128xbf16>, vector<2x8x128xf32> -> vector<2x8x128xf32>
    "tpu.trace_stop"() : () -> ()
    %201 = vector.broadcast %3 : vector<2x1x128xf32> to vector<2x8x128xf32>
    %202 = arith.addf %200, %201 : vector<2x8x128xf32>
    %cst_45 = arith.constant dense<0xFF800000> : vector<2x8xf32>
    %203 = vector.multi_reduction <maximumf>, %202, %cst_45 [2] : vector<2x8x128xf32> to vector<2x8xf32>
    %204 = vector.shape_cast %203 : vector<2x8xf32> to vector<2x8x1xf32>
    %205 = vector.broadcast %204 : vector<2x8x1xf32> to vector<2x8x128xf32>
    %206 = arith.subf %202, %205 : vector<2x8x128xf32>
    %207 = math.exp %206 : vector<2x8x128xf32>
    %cst_46 = arith.constant dense<0.000000e+00> : vector<2x8xf32>
    %208 = vector.multi_reduction <add>, %207, %cst_46 [2] : vector<2x8x128xf32> to vector<2x8xf32>
    %209 = vector.shape_cast %208 : vector<2x8xf32> to vector<2x8x1xf32>
    %210 = tpu.reciprocal %209 {approx = true} : vector<2x8x1xf32> -> vector<2x8x1xf32>
    %211 = vector.broadcast %210 : vector<2x8x1xf32> to vector<2x8x128xf32>
    %212 = arith.mulf %207, %211 : vector<2x8x128xf32>
    %213 = arith.truncf %212 : vector<2x8x128xf32> to vector<2x8x128xbf16>
    "tpu.trace_start"() <{level = 10 : i32, message = "bts,bsh->bth"}> : () -> ()
    %cst_47 = arith.constant dense<0.000000e+00> : vector<2x8x32xf32>
    %214 = tpu.matmul %213, %1, %cst_47 {dimension_numbers = #tpu.dot_dimension_numbers<[2], [1], [1], [2], [0, 0, 0, 1, 1, 2], [0], [0]>} : vector<2x8x128xbf16>, vector<2x128x32xbf16>, vector<2x8x32xf32> -> vector<2x8x32xf32>
    "tpu.trace_stop"() : () -> ()
    %215 = vector.shape_cast %214 : vector<2x8x32xf32> to vector<16x32xf32>
    %216 = arith.truncf %215 : vector<16x32xf32> to vector<16x32xbf16>
    %cst_48 = arith.constant dense<0.000000e+00> : vector<16x32xf32>
    %217 = tpu.matmul %216, %8, %cst_48 {dimension_numbers = #tpu.dot_dimension_numbers<[1], [0], [0], [1], [0, 0, 1, 1], [], []>} : vector<16x32xbf16>, vector<32x32xbf16>, vector<16x32xf32> -> vector<16x32xf32>
    %218 = arith.addf %217, %195 : vector<16x32xf32>
    %219 = math.tanh %218 : vector<16x32xf32>
    %c0_i32 = arith.constant 0 : i32
    %220 = arith.sitofp %c0_i32 : i32 to f32
    %221 = vector.broadcast %220 : f32 to vector<16x96xf32>
    %222 = tpu.concatenate %219, %221 in 1 : vector<16x32xf32>, vector<16x96xf32> -> vector<16x128xf32>
    %c0_49 = arith.constant 0 : index
    %c0_50 = arith.constant 0 : index
    %223 = vector.load %arg12[%c0_49, %c0_50] : memref<16x128xf32, #tpu.memory_space<vmem>>, vector<16x128xf32>
    tpu.vector_store %arg12[%c0_49, %c0_50], %222 {strides = array<i32>} : memref<16x128xf32, #tpu.memory_space<vmem>>, vector<16x128xf32>,
    %c0_51 = arith.constant 0 : index
    %c0_52 = arith.constant 0 : index
    %c0_53 = arith.constant 0 : index
    %224 = vector.load %arg13[%c0_51, %c0_52, %c0_53] : memref<2x8x128xf32, #tpu.memory_space<vmem>>, vector<2x8x128xf32>
    tpu.vector_store %arg13[%c0_51, %c0_52, %c0_53], %212 {strides = array<i32>} : memref<2x8x128xf32, #tpu.memory_space<vmem>>, vector<2x8x128xf32>,
    return
  }
}

</mosaic_0001>

<llo_original>
// kernel: tpu_custom_call.1
$region0: #{tpu_custom_call.1}
  #allocation0 [shape = 'u32[]', space=smem, size = 0x4, offset = 0x4, fixed_abs, tag = 'smem constant byte address 0x4 - core index']
  #allocation1 [shape = 'u32[144,128]{1,0:T(1,128)}', space=vmem, size = 0x12000, scoped, tag = 'internal scratch']
  %s0 = inlined_call_operand.vmem [shape: bf16[16,32], index: 0, kind: input, shape index: {}]
  %s1 = inlined_call_operand.vmem [shape: bf16[2,128,32], index: 1, kind: input, shape index: {}]
  %s2 = inlined_call_operand.vmem [shape: bf16[2,32,128], index: 2, kind: input, shape index: {}]
  %s3 = inlined_call_operand.vmem [shape: f32[2,1,128], index: 3, kind: input, shape index: {}]
  %s4 = inlined_call_operand.vmem [shape: f32[2,32], index: 4, kind: input, shape index: {}]
  %s5 = inlined_call_operand.vmem [shape: f32[2,32], index: 5, kind: input, shape index: {}]
  %s6 = inlined_call_operand.vmem [shape: bf16[32,128], index: 6, kind: input, shape index: {}]
  %s7 = inlined_call_operand.vmem [shape: bf16[32,128], index: 7, kind: input, shape index: {}]
  %s8 = inlined_call_operand.vmem [shape: f32[1,128], index: 8, kind: input, shape index: {}]
  %s9 = inlined_call_operand.vmem [shape: bf16[32,32], index: 9, kind: input, shape index: {}]
  %s10 = inlined_call_operand.vmem [shape: bf16[32,32], index: 10, kind: input, shape index: {}]
  %s11 = inlined_call_operand.vmem [shape: bf16[32,32], index: 11, kind: input, shape index: {}]
  %s12 = inlined_call_operand.hbm [shape: f32[16,128], index: 12, kind: output, shape index: {0}]
  %s13 = inlined_call_operand.hbm [shape: f32[2,8,128], index: 13, kind: output, shape index: {1}]
  %14 = xla_tuple %s12, %s13
  %s15 = sld [smem:[#allocation0]]
  $region66: #{tpu_custom_call.1} parent=0
    _
  %s17 = ssub.s32 1, %s15
  %s18 = scalar_select 0, %s17, %s15
  $region1: #{tpu_custom_call.1} parent=0
    #allocation2 [shape = 'u8[8192]{0}', space=vmem, size = 0x2000, scoped, tag = 'output window, operand 0, single buffered']
    #allocation3 [shape = 's32[1]{0}', space=sflag, size = 0x4, scoped, tag = 'scoped memory for tpu_custom_call.1']
    #allocation4 [shape = 'u8[8192]{0}', space=vmem, size = 0x2000, scoped, tag = 'output window, operand 1, single buffered']
    #allocation5 [shape = 's32[1]{0}', space=sflag, size = 0x4, scoped, tag = 'scoped memory for tpu_custom_call.1']
    %19 = vsyncpa [#allocation3], 0
    %20 = vsyncpa [#allocation5], 0
    // Predicated region
    $region2: #{tpu_custom_call.1} parent=1 // pred_check
      _
    $region3: #{tpu_custom_call.1} parent=1 // pred_check_branch
      %22 = sbr.rel (0) target = $region5
    $region4: #{tpu_custom_call.1} parent=1 // pred_region
      _
    $region5: #{tpu_custom_call.1} parent=1 // pred_fallthru
      _
    // Predicated region
    $region6: #{tpu_custom_call.1} parent=1 // pred_check
      _
    $region7: #{tpu_custom_call.1} parent=1 // pred_check_branch
      %24 = sbr.rel (0) target = $region9
    $region8: #{tpu_custom_call.1} parent=1 // pred_region
      _
    $region9: #{tpu_custom_call.1} parent=1 // pred_fallthru
      _
    // Predicated region
    $region10: #{tpu_custom_call.1} parent=1 // pred_check
      _
    $region11: #{tpu_custom_call.1} parent=1 // pred_check_branch
      %26 = sbr.rel (0) target = $region13
    $region12: #{tpu_custom_call.1} parent=1 // pred_region
      _
    $region13: #{tpu_custom_call.1} parent=1 // pred_fallthru
      _
    // Predicated region
    $region14: #{tpu_custom_call.1} parent=1 // pred_check
      _
    $region15: #{tpu_custom_call.1} parent=1 // pred_check_branch
      %28 = sbr.rel (0) target = $region17
    $region16: #{tpu_custom_call.1} parent=1 // pred_region
      _
    $region17: #{tpu_custom_call.1} parent=1 // pred_fallthru
      _
    // Predicated region
    $region18: #{tpu_custom_call.1} parent=1 // pred_check
      _
    $region19: #{tpu_custom_call.1} parent=1 // pred_check_branch
      %30 = sbr.rel (0) target = $region21
    $region20: #{tpu_custom_call.1} parent=1 // pred_region
      _
    $region21: #{tpu_custom_call.1} parent=1 // pred_fallthru
      _
    // Predicated region
    $region22: #{tpu_custom_call.1} parent=1 // pred_check
      _
    $region23: #{tpu_custom_call.1} parent=1 // pred_check_branch
      %32 = sbr.rel (0) target = $region25
    $region24: #{tpu_custom_call.1} parent=1 // pred_region
      _
    $region25: #{tpu_custom_call.1} parent=1 // pred_fallthru
      _
    // Predicated region
    $region26: #{tpu_custom_call.1} parent=1 // pred_check
      _
    $region27: #{tpu_custom_call.1} parent=1 // pred_check_branch
      %34 = sbr.rel (0) target = $region29
    $region28: #{tpu_custom_call.1} parent=1 // pred_region
      _
    $region29: #{tpu_custom_call.1} parent=1 // pred_fallthru
      _
    // Predicated region
    $region30: #{tpu_custom_call.1} parent=1 // pred_check
      _
    $region31: #{tpu_custom_call.1} parent=1 // pred_check_branch
      %36 = sbr.rel (0) target = $region33
    $region32: #{tpu_custom_call.1} parent=1 // pred_region
      _
    $region33: #{tpu_custom_call.1} parent=1 // pred_fallthru
      _
    // Predicated region
    $region34: #{tpu_custom_call.1} parent=1 // pred_check
      _
    $region35: #{tpu_custom_call.1} parent=1 // pred_check_branch
      %38 = sbr.rel (0) target = $region37
    $region36: #{tpu_custom_call.1} parent=1 // pred_region
      _
    $region37: #{tpu_custom_call.1} parent=1 // pred_fallthru
      _
    // Predicated region
    $region38: #{tpu_custom_call.1} parent=1 // pred_check
      _
    $region39: #{tpu_custom_call.1} parent=1 // pred_check_branch
      %40 = sbr.rel (0) target = $region41
    $region40: #{tpu_custom_call.1} parent=1 // pred_region
      _
    $region41: #{tpu_custom_call.1} parent=1 // pred_fallthru
      _
    // Predicated region
    $region42: #{tpu_custom_call.1} parent=1 // pred_check
      _
    $region43: #{tpu_custom_call.1} parent=1 // pred_check_branch
      %42 = sbr.rel (0) target = $region45
    $region44: #{tpu_custom_call.1} parent=1 // pred_region
      _
    $region45: #{tpu_custom_call.1} parent=1 // pred_fallthru
      _
    // Predicated region
    $region46: #{tpu_custom_call.1} parent=1 // pred_check
      _
    $region47: #{tpu_custom_call.1} parent=1 // pred_check_branch
      %44 = sbr.rel (0) target = $region49
    $region48: #{tpu_custom_call.1} parent=1 // pred_region
      _
    $region49: #{tpu_custom_call.1} parent=1 // pred_fallthru
      _
    %v46 = vld [vmem:[%s0] sm:$0xf]
    %v47 = vld [vmem:[%s0 + $0x4] sm:$0xf]
    %v48 = vld [vmem:[%s1] sm:$0xf]
    %v49 = vld [vmem:[%s1 + $0x4] sm:$0xf]
    %v50 = vld [vmem:[%s1 + $0x8] sm:$0xf]
    %v51 = vld [vmem:[%s1 + $0xc] sm:$0xf]
    %v52 = vld [vmem:[%s1 + $0x10] sm:$0xf]
    %v53 = vld [vmem:[%s1 + $0x14] sm:$0xf]
    %v54 = vld [vmem:[%s1 + $0x18] sm:$0xf]
    %v55 = vld [vmem:[%s1 + $0x1c] sm:$0xf]
    %v56 = vld [vmem:[%s1 + $0x20] sm:$0xf]
    %v57 = vld [vmem:[%s1 + $0x24] sm:$0xf]
    %v58 = vld [vmem:[%s1 + $0x28] sm:$0xf]
    %v59 = vld [vmem:[%s1 + $0x2c] sm:$0xf]
    %v60 = vld [vmem:[%s1 + $0x30] sm:$0xf]
    %v61 = vld [vmem:[%s1 + $0x34] sm:$0xf]
    %v62 = vld [vmem:[%s1 + $0x38] sm:$0xf]
    %v63 = vld [vmem:[%s1 + $0x3c] sm:$0xf]
    %v64 = vld [vmem:[%s1 + $0x40] sm:$0xf]
    %v65 = vld [vmem:[%s1 + $0x44] sm:$0xf]
    %v66 = vld [vmem:[%s1 + $0x48] sm:$0xf]
    %v67 = vld [vmem:[%s1 + $0x4c] sm:$0xf]
    %v68 = vld [vmem:[%s1 + $0x50] sm:$0xf]
    %v69 = vld [vmem:[%s1 + $0x54] sm:$0xf]
    %v70 = vld [vmem:[%s1 + $0x58] sm:$0xf]
    %v71 = vld [vmem:[%s1 + $0x5c] sm:$0xf]
    %v72 = vld [vmem:[%s1 + $0x60] sm:$0xf]
    %v73 = vld [vmem:[%s1 + $0x64] sm:$0xf]
    %v74 = vld [vmem:[%s1 + $0x68] sm:$0xf]
    %v75 = vld [vmem:[%s1 + $0x6c] sm:$0xf]
    %v76 = vld [vmem:[%s1 + $0x70] sm:$0xf]
    %v77 = vld [vmem:[%s1 + $0x74] sm:$0xf]
    %v78 = vld [vmem:[%s1 + $0x78] sm:$0xf]
    %v79 = vld [vmem:[%s1 + $0x7c] sm:$0xf]
    %v80 = vld [vmem:[%s2] sm:$0xf]
    %v81 = vld [vmem:[%s2 + $0x4] sm:$0xf]
    %v82 = vld [vmem:[%s2 + $0x8] sm:$0xf]
    %v83 = vld [vmem:[%s2 + $0xc] sm:$0xf]
    %v84 = vld [vmem:[%s2 + $0x10] sm:$0xf]
    %v85 = vld [vmem:[%s2 + $0x14] sm:$0xf]
    %v86 = vld [vmem:[%s2 + $0x18] sm:$0xf]
    %v87 = vld [vmem:[%s2 + $0x1c] sm:$0xf]
    %v88 = vld [vmem:[%s3] sm:$0x1]
    %v89 = vld [vmem:[%s3 + $0x1] sm:$0x1]
    %v90 = vld [vmem:[%s6] sm:$0xf]
    %v91 = vld [vmem:[%s6 + $0x4] sm:$0xf]
    %v92 = vld [vmem:[%s6 + $0x8] sm:$0xf]
    %v93 = vld [vmem:[%s6 + $0xc] sm:$0xf]
    %v94 = vld [vmem:[%s7] sm:$0xf]
    %v95 = vld [vmem:[%s7 + $0x4] sm:$0xf]
    %v96 = vld [vmem:[%s7 + $0x8] sm:$0xf]
    %v97 = vld [vmem:[%s7 + $0xc] sm:$0xf]
    %v98 = vld [vmem:[%s8] sm:$0x1]
    %v99 = vld [vmem:[%s9] sm:$0xf]
    %v100 = vld [vmem:[%s9 + $0x4] sm:$0xf]
    %v101 = vld [vmem:[%s9 + $0x8] sm:$0xf]
    %v102 = vld [vmem:[%s9 + $0xc] sm:$0xf]
    %v103 = vld [vmem:[%s10] sm:$0xf]
    %v104 = vld [vmem:[%s10 + $0x4] sm:$0xf]
    %v105 = vld [vmem:[%s10 + $0x8] sm:$0xf]
    %v106 = vld [vmem:[%s10 + $0xc] sm:$0xf]
    %v107 = vld [vmem:[%s11] sm:$0xf]
    %v108 = vld [vmem:[%s11 + $0x4] sm:$0xf]
    %v109 = vld [vmem:[%s11 + $0x8] sm:$0xf]
    %v110 = vld [vmem:[%s11 + $0xc] sm:$0xf]
    %v112 = vlaneseq
    %v113 = vshrl.u32 %v112, 7
    %v114 = vsub.s32 0, %v113
    %v115 = vrot.slane %v98, %v114
    %v119 = vunpack.c.l.b16 %v46
    %v120 = vunpack.c.l.b16 %v47
    %v121 = vpack.c.b16 %v120, %v119
    %v126 = vunpack.c.l.b16 %v90
    %v127 = vunpack.c.l.b16 %v91
    %v128 = vunpack.c.l.b16 %v92
    %v129 = vunpack.c.l.b16 %v93
    %v130 = vpack.c.b16 %v127, %v126
    %v131 = vpack.c.b16 %v129, %v128
    %vm134 = vcmask 261120
    %v136 = vsel %vm134, %v121, 0
    %138 = vmatprep.subr.bf16.mxu0 0
    %139 = vmatpush1.bf16.msra.mxu0 0
    %140 = vmatprep.subr.bf16.mxu0 0
    %141 = vmatpush1.bf16.msra.mxu0 0
    %142 = vmatprep.subr.bf16.mxu0 0
    %143 = vmatpush1.bf16.msra.mxu0 0
    %144 = vmatprep.subr.bf16.mxu0 0
    %145 = vmatpush1.bf16.msra.mxu0 0
    %146 = vmatprep.subr.bf16.mxu0 0
    %147 = vmatpush1.bf16.msra.mxu0 0
    %148 = vmatprep.subr.bf16.mxu0 0
    %149 = vmatpush1.bf16.msra.mxu0 0
    %150 = vmatprep.subr.bf16.mxu0 0
    %151 = vmatpush1.bf16.msra.mxu0 %v131
    %152 = vmatprep.subr.bf16.mxu0 0
    %153 = vmatpush1.bf16.msra.mxu0 %v130
    %154 = vmatprep.subr.bf16.mxu0 0
    %155 = vmatpush2.bf16.msra.mxu0 0
    %156 = vmatprep.subr.bf16.mxu0 0
    %157 = vmatpush2.bf16.msra.mxu0 0
    %158 = vmatprep.subr.bf16.mxu0 0
    %159 = vmatpush2.bf16.msra.mxu0 0
    %160 = vmatprep.subr.bf16.mxu0 0
    %161 = vmatpush2.bf16.msra.mxu0 0
    %162 = vmatprep.subr.bf16.mxu0 0
    %163 = vmatpush2.bf16.msra.mxu0 0
    %164 = vmatprep.subr.bf16.mxu0 0
    %165 = vmatpush2.bf16.msra.mxu0 0
    %166 = vmatprep.subr.bf16.mxu0 0
    %167 = vmatpush2.bf16.msra.mxu0 0
    %168 = vmatprep.subr.bf16.mxu0 0
    %169 = vmatpush2.bf16.msra.mxu0 0
    %170 = vmatprep.mubr.bf16.mxu0 0
    %171 = vmatmul.mubr.bf16.gmra.mxu0 %v136
    %v172 = vpop.f32.mrf.mxu0
    %v173 = vadd.f32 %v115, %v172
    %v174 = vpop.f32.mrf.mxu0
    %v175 = vpop.f32.mrf.mxu0
    %v176 = vadd.f32 %v115, %v175
    %v177 = vpop.f32.mrf.mxu0
    %178 = vdwg.mxu0
    %v179 = vld [vmem:[%s4] sm:$0x3]
    %v180 = vld [vmem:[%s5] sm:$0x3]
    %v181 = vpack.c.bf16 %v179, %v179
    %v186 = vunpack.c.l.b16 %v94
    %v187 = vunpack.c.l.b16 %v95
    %v188 = vunpack.c.l.b16 %v96
    %v189 = vunpack.c.l.b16 %v97
    %v190 = vpack.c.b16 %v187, %v186
    %v191 = vpack.c.b16 %v189, %v188
    %v195 = vsel %vm134, %v181, 0
    %197 = vmatprep.subr.bf16.mxu0 0
    %198 = vmatpush1.bf16.msra.mxu0 0
    %199 = vmatprep.subr.bf16.mxu0 0
    %200 = vmatpush1.bf16.msra.mxu0 0
    %201 = vmatprep.subr.bf16.mxu0 0
    %202 = vmatpush1.bf16.msra.mxu0 0
    %203 = vmatprep.subr.bf16.mxu0 0
    %204 = vmatpush1.bf16.msra.mxu0 0
    %205 = vmatprep.subr.bf16.mxu0 0
    %206 = vmatpush1.bf16.msra.mxu0 0
    %207 = vmatprep.subr.bf16.mxu0 0
    %208 = vmatpush1.bf16.msra.mxu0 0
    %209 = vmatprep.subr.bf16.mxu0 0
    %210 = vmatpush1.bf16.msra.mxu0 %v191
    %211 = vmatprep.subr.bf16.mxu0 0
    %212 = vmatpush1.bf16.msra.mxu0 %v190
    %213 = vmatprep.subr.bf16.mxu0 0
    %214 = vmatpush2.bf16.msra.mxu0 0
    %215 = vmatprep.subr.bf16.mxu0 0
    %216 = vmatpush2.bf16.msra.mxu0 0
    %217 = vmatprep.subr.bf16.mxu0 0
    %218 = vmatpush2.bf16.msra.mxu0 0
    %219 = vmatprep.subr.bf16.mxu0 0
    %220 = vmatpush2.bf16.msra.mxu0 0
    %221 = vmatprep.subr.bf16.mxu0 0
    %222 = vmatpush2.bf16.msra.mxu0 0
    %223 = vmatprep.subr.bf16.mxu0 0
    %224 = vmatpush2.bf16.msra.mxu0 0
    %225 = vmatprep.subr.bf16.mxu0 0
    %226 = vmatpush2.bf16.msra.mxu0 0
    %227 = vmatprep.subr.bf16.mxu0 0
    %228 = vmatpush2.bf16.msra.mxu0 0
    %229 = vmatprep.mubr.bf16.mxu0 0
    %230 = vmatmul.mubr.bf16.gmra.mxu0 %v195
    %v231 = vpop.f32.mrf.mxu0
    %v232 = vadd.f32 0.0, %v231
    %v233 = vpop.f32.mrf.mxu0
    %v234 = vpop.f32.mrf.mxu0
    %v235 = vpop.f32.mrf.mxu0
    %236 = vdwg.mxu0
    %v238 = vrot.slane %v232, 1
    %v241 = vadd.f32 %v173, %v232
    %v242 = vadd.f32 %v176, %v238
    %v243 = vxor.u32 %v241, 2147483648
    %v244 = vxor.u32 %v242, 2147483648
    %v245 = vmul.f32 %v243, 1.442695
    %v246 = vpow.pop %v245
    %v247 = vmul.f32 %v244, 1.442695
    %v248 = vpow.pop %v247
    %v249 = vadd.f32 %v246, 1.0
    %v250 = vadd.f32 %v248, 1.0
    %v251 = vrcp.pop %v249
    %v252 = vmul.f32 1.0, %v251
    %v253 = vrcp.pop %v250
    %v254 = vmul.f32 1.0, %v253
    %v255 = vtanh.pop %v241
    %v256 = vtanh.pop %v242
    %v258 = vrot.slane %v180, 1
    %259 = vrot.lane.b32.xlu0 %v180, 32
    %v260 = vpop.permute.xlu0 %259
    %261 = vrot.lane.b32.xlu0 %v258, 32
    %v262 = vpop.permute.xlu0 %261
    %v265 = vmul.f32 %v252, %v260
    %v266 = vmul.f32 %v254, %v262
    %269 = vrot.lane.b32.xlu0 %v255, 32
    %v270 = vpop.permute.xlu0 %269
    %271 = vrot.lane.b32.xlu0 %v256, 32
    %v272 = vpop.permute.xlu0 %271
    %v275 = vmul.f32 %v252, %v270
    %v276 = vmul.f32 %v254, %v272
    %279 = vrot.lane.b32.xlu0 %v275, 32
    %v280 = vpop.permute.xlu0 %279
    %281 = vrot.lane.b32.xlu0 %v276, 32
    %v282 = vpop.permute.xlu0 %281
    %v285 = vadd.f32 %v265, %v280
    %v286 = vadd.f32 %v266, %v282
    %v287 = vtanh.pop %v285
    %v288 = vtanh.pop %v286
    %291 = vrot.lane.b32.xlu0 %v287, 32
    %v292 = vpop.permute.xlu0 %291
    %293 = vrot.lane.b32.xlu0 %v288, 32
    %v294 = vpop.permute.xlu0 %293
    %v297 = vmul.f32 %v252, %v292
    %v298 = vmul.f32 %v254, %v294
    %v299 = vpack.c.bf16 %v297, %v297
    %v300 = vpack.c.bf16 %v298, %v298
    %v303 = vunpack.c.l.b16 %v299
    %v304 = vunpack.c.l.b16 %v300
    %v305 = vrot.slane %v304, 7
    %vm306 = vcmask 1041409
    %v307 = vsel %vm306, %v305, %v303
    %v308 = vpack.c.b16 %v307, %v307
    %309 = vrot.lane.b32.xlu0 %v308, 64
    %v310 = vpop.permute.xlu0 %309
    %v312 = vsel %vm134, %v310, 0
    %314 = vmatprep.subr.bf16.mxu0 0
    %315 = vmatpush1.bf16.msra.mxu0 0
    %316 = vmatprep.subr.bf16.mxu0 0
    %317 = vmatpush1.bf16.msra.mxu0 0
    %318 = vmatprep.subr.bf16.mxu0 0
    %319 = vmatpush1.bf16.msra.mxu0 0
    %320 = vmatprep.subr.bf16.mxu0 0
    %321 = vmatpush1.bf16.msra.mxu0 0
    %322 = vmatprep.subr.bf16.mxu0 0
    %323 = vmatpush1.bf16.msra.mxu0 0
    %324 = vmatprep.subr.bf16.mxu0 0
    %325 = vmatpush1.bf16.msra.mxu0 0
    %326 = vmatprep.subr.bf16.mxu0 0
    %327 = vmatpush1.bf16.msra.mxu0 %v191
    %328 = vmatprep.subr.bf16.mxu0 0
    %329 = vmatpush1.bf16.msra.mxu0 %v190
    %330 = vmatprep.subr.bf16.mxu0 0
    %331 = vmatpush2.bf16.msra.mxu0 0
    %332 = vmatprep.subr.bf16.mxu0 0
    %333 = vmatpush2.bf16.msra.mxu0 0
    %334 = vmatprep.subr.bf16.mxu0 0
    %335 = vmatpush2.bf16.msra.mxu0 0
    %336 = vmatprep.subr.bf16.mxu0 0
    %337 = vmatpush2.bf16.msra.mxu0 0
    %338 = vmatprep.subr.bf16.mxu0 0
    %339 = vmatpush2.bf16.msra.mxu0 0
    %340 = vmatprep.subr.bf16.mxu0 0
    %341 = vmatpush2.bf16.msra.mxu0 0
    %342 = vmatprep.subr.bf16.mxu0 0
    %343 = vmatpush2.bf16.msra.mxu0 0
    %344 = vmatprep.subr.bf16.mxu0 0
    %345 = vmatpush2.bf16.msra.mxu0 0
    %346 = vmatprep.mubr.bf16.mxu0 0
    %347 = vmatmul.mubr.bf16.gmra.mxu0 %v312
    %v348 = vpop.f32.mrf.mxu0
    %v349 = vadd.f32 0.0, %v348
    %v350 = vpop.f32.mrf.mxu0
    %v351 = vpop.f32.mrf.mxu0
    %v352 = vpop.f32.mrf.mxu0
    %353 = vdwg.mxu0
    %v355 = vrot.slane %v349, 7
    %v358 = vadd.f32 %v173, %v355
    %v359 = vadd.f32 %v176, %v349
    %v360 = vxor.u32 %v358, 2147483648
    %v361 = vxor.u32 %v359, 2147483648
    %v362 = vmul.f32 %v360, 1.442695
    %v363 = vpow.pop %v362
    %v364 = vmul.f32 %v361, 1.442695
    %v365 = vpow.pop %v364
    %v366 = vadd.f32 %v363, 1.0
    %v367 = vadd.f32 %v365, 1.0
    %v368 = vrcp.pop %v366
    %v369 = vmul.f32 1.0, %v368
    %v370 = vrcp.pop %v367
    %v371 = vmul.f32 1.0, %v370
    %v372 = vtanh.pop %v358
    %v373 = vtanh.pop %v359
    %v376 = vrot.slane %v285, 7
    %v377 = vrot.slane %v286, 7
    %v380 = vmul.f32 %v369, %v376
    %v381 = vmul.f32 %v371, %v377
    %384 = vrot.lane.b32.xlu0 %v372, 32
    %v385 = vpop.permute.xlu0 %384
    %386 = vrot.lane.b32.xlu0 %v373, 32
    %v387 = vpop.permute.xlu0 %386
    %v390 = vmul.f32 %v369, %v385
    %v391 = vmul.f32 %v371, %v387
    %394 = vrot.lane.b32.xlu0 %v390, 32
    %v395 = vpop.permute.xlu0 %394
    %396 = vrot.lane.b32.xlu0 %v391, 32
    %v397 = vpop.permute.xlu0 %396
    %v400 = vadd.f32 %v380, %v395
    %v401 = vadd.f32 %v381, %v397
    %v402 = vtanh.pop %v400
    %v403 = vtanh.pop %v401
    %406 = vrot.lane.b32.xlu0 %v402, 32
    %v407 = vpop.permute.xlu0 %406
    %408 = vrot.lane.b32.xlu0 %v403, 32
    %v409 = vpop.permute.xlu0 %408
    %v412 = vmul.f32 %v369, %v407
    %v413 = vmul.f32 %v371, %v409
    %v414 = vpack.c.bf16 %v412, %v412
    %v415 = vpack.c.bf16 %v413, %v413
    %v418 = vunpack.c.l.b16 %v414
    %v419 = vunpack.c.l.b16 %v415
    %v420 = vrot.slane %v418, 1
    %v421 = vsel %vm306, %v419, %v420
    %v422 = vpack.c.b16 %v421, %v421
    %423 = vrot.lane.b32.xlu0 %v422, 64
    %v424 = vpop.permute.xlu0 %423
    %v426 = vsel %vm134, %v424, 0
    %428 = vmatprep.subr.bf16.mxu0 0
    %429 = vmatpush1.bf16.msra.mxu0 0
    %430 = vmatprep.subr.bf16.mxu0 0
    %431 = vmatpush1.bf16.msra.mxu0 0
    %432 = vmatprep.subr.bf16.mxu0 0
    %433 = vmatpush1.bf16.msra.mxu0 0
    %434 = vmatprep.subr.bf16.mxu0 0
    %435 = vmatpush1.bf16.msra.mxu0 0
    %436 = vmatprep.subr.bf16.mxu0 0
    %437 = vmatpush1.bf16.msra.mxu0 0
    %438 = vmatprep.subr.bf16.mxu0 0
    %439 = vmatpush1.bf16.msra.mxu0 0
    %440 = vmatprep.subr.bf16.mxu0 0
    %441 = vmatpush1.bf16.msra.mxu0 %v191
    %442 = vmatprep.subr.bf16.mxu0 0
    %443 = vmatpush1.bf16.msra.mxu0 %v190
    %444 = vmatprep.subr.bf16.mxu0 0
    %445 = vmatpush2.bf16.msra.mxu0 0
    %446 = vmatprep.subr.bf16.mxu0 0
    %447 = vmatpush2.bf16.msra.mxu0 0
    %448 = vmatprep.subr.bf16.mxu0 0
    %449 = vmatpush2.bf16.msra.mxu0 0
    %450 = vmatprep.subr.bf16.mxu0 0
    %451 = vmatpush2.bf16.msra.mxu0 0
    %452 = vmatprep.subr.bf16.mxu0 0
    %453 = vmatpush2.bf16.msra.mxu0 0
    %454 = vmatprep.subr.bf16.mxu0 0
    %455 = vmatpush2.bf16.msra.mxu0 0
    %456 = vmatprep.subr.bf16.mxu0 0
    %457 = vmatpush2.bf16.msra.mxu0 0
    %458 = vmatprep.subr.bf16.mxu0 0
    %459 = vmatpush2.bf16.msra.mxu0 0
    %460 = vmatprep.mubr.bf16.mxu0 0
    %461 = vmatmul.mubr.bf16.gmra.mxu0 %v426
    %v462 = vpop.f32.mrf.mxu0
    %v463 = vadd.f32 0.0, %v462
    %v464 = vpop.f32.mrf.mxu0
    %v465 = vpop.f32.mrf.mxu0
    %v466 = vpop.f32.mrf.mxu0
    %467 = vdwg.mxu0
    %v469 = vrot.slane %v463, 6
    %v470 = vrot.slane %v463, 7
    %v473 = vadd.f32 %v173, %v469
    %v474 = vadd.f32 %v176, %v470
    %v475 = vxor.u32 %v473, 2147483648
    %v476 = vxor.u32 %v474, 2147483648
    %v477 = vmul.f32 %v475, 1.442695
    %v478 = vpow.pop %v477
    %v479 = vmul.f32 %v476, 1.442695
    %v480 = vpow.pop %v479
    %v481 = vadd.f32 %v478, 1.0
    %v482 = vadd.f32 %v480, 1.0
    %v483 = vrcp.pop %v481
    %v484 = vmul.f32 1.0, %v483
    %v485 = vrcp.pop %v482
    %v486 = vmul.f32 1.0, %v485
    %v487 = vtanh.pop %v473
    %v488 = vtanh.pop %v474
    %v491 = vrot.slane %v400, 7
    %v492 = vrot.slane %v401, 7
    %v495 = vmul.f32 %v484, %v491
    %v496 = vmul.f32 %v486, %v492
    %499 = vrot.lane.b32.xlu0 %v487, 32
    %v500 = vpop.permute.xlu0 %499
    %501 = vrot.lane.b32.xlu0 %v488, 32
    %v502 = vpop.permute.xlu0 %501
    %v505 = vmul.f32 %v484, %v500
    %v506 = vmul.f32 %v486, %v502
    %509 = vrot.lane.b32.xlu0 %v505, 32
    %v510 = vpop.permute.xlu0 %509
    %511 = vrot.lane.b32.xlu0 %v506, 32
    %v512 = vpop.permute.xlu0 %511
    %v515 = vadd.f32 %v495, %v510
    %v516 = vadd.f32 %v496, %v512
    %v517 = vtanh.pop %v515
    %v518 = vtanh.pop %v516
    %521 = vrot.lane.b32.xlu0 %v517, 32
    %v522 = vpop.permute.xlu0 %521
    %523 = vrot.lane.b32.xlu0 %v518, 32
    %v524 = vpop.permute.xlu0 %523
    %v527 = vmul.f32 %v484, %v522
    %v528 = vmul.f32 %v486, %v524
    %v529 = vpack.c.bf16 %v527, %v527
    %v530 = vpack.c.bf16 %v528, %v528
    %v533 = vunpack.c.l.b16 %v529
    %v534 = vunpack.c.l.b16 %v530
    %v535 = vrot.slane %v533, 2
    %v536 = vrot.slane %v534, 1
    %v537 = vsel %vm306, %v536, %v535
    %v538 = vpack.c.b16 %v537, %v537
    %539 = vrot.lane.b32.xlu0 %v538, 64
    %v540 = vpop.permute.xlu0 %539
    %v542 = vsel %vm134, %v540, 0
    %544 = vmatprep.subr.bf16.mxu0 0
    %545 = vmatpush1.bf16.msra.mxu0 0
    %546 = vmatprep.subr.bf16.mxu0 0
    %547 = vmatpush1.bf16.msra.mxu0 0
    %548 = vmatprep.subr.bf16.mxu0 0
    %549 = vmatpush1.bf16.msra.mxu0 0
    %550 = vmatprep.subr.bf16.mxu0 0
    %551 = vmatpush1.bf16.msra.mxu0 0
    %552 = vmatprep.subr.bf16.mxu0 0
    %553 = vmatpush1.bf16.msra.mxu0 0
    %554 = vmatprep.subr.bf16.mxu0 0
    %555 = vmatpush1.bf16.msra.mxu0 0
    %556 = vmatprep.subr.bf16.mxu0 0
    %557 = vmatpush1.bf16.msra.mxu0 %v191
    %558 = vmatprep.subr.bf16.mxu0 0
    %559 = vmatpush1.bf16.msra.mxu0 %v190
    %560 = vmatprep.subr.bf16.mxu0 0
    %561 = vmatpush2.bf16.msra.mxu0 0
    %562 = vmatprep.subr.bf16.mxu0 0
    %563 = vmatpush2.bf16.msra.mxu0 0
    %564 = vmatprep.subr.bf16.mxu0 0
    %565 = vmatpush2.bf16.msra.mxu0 0
    %566 = vmatprep.subr.bf16.mxu0 0
    %567 = vmatpush2.bf16.msra.mxu0 0
    %568 = vmatprep.subr.bf16.mxu0 0
    %569 = vmatpush2.bf16.msra.mxu0 0
    %570 = vmatprep.subr.bf16.mxu0 0
    %571 = vmatpush2.bf16.msra.mxu0 0
    %572 = vmatprep.subr.bf16.mxu0 0
    %573 = vmatpush2.bf16.msra.mxu0 0
    %574 = vmatprep.subr.bf16.mxu0 0
    %575 = vmatpush2.bf16.msra.mxu0 0
    %576 = vmatprep.mubr.bf16.mxu0 0
    %577 = vmatmul.mubr.bf16.gmra.mxu0 %v542
    %v578 = vpop.f32.mrf.mxu0
    %v579 = vadd.f32 0.0, %v578
    %v580 = vpop.f32.mrf.mxu0
    %v581 = vpop.f32.mrf.mxu0
    %v582 = vpop.f32.mrf.mxu0
    %583 = vdwg.mxu0
    %v585 = vrot.slane %v579, 5
    %v586 = vrot.slane %v579, 6
    %v589 = vadd.f32 %v173, %v585
    %v590 = vadd.f32 %v176, %v586
    %v591 = vxor.u32 %v589, 2147483648
    %v592 = vxor.u32 %v590, 2147483648
    %v593 = vmul.f32 %v591, 1.442695
    %v594 = vpow.pop %v593
    %v595 = vmul.f32 %v592, 1.442695
    %v596 = vpow.pop %v595
    %v597 = vadd.f32 %v594, 1.0
    %v598 = vadd.f32 %v596, 1.0
    %v599 = vrcp.pop %v597
    %v600 = vmul.f32 1.0, %v599
    %v601 = vrcp.pop %v598
    %v602 = vmul.f32 1.0, %v601
    %v603 = vtanh.pop %v589
    %v604 = vtanh.pop %v590
    %v607 = vrot.slane %v515, 7
    %v608 = vrot.slane %v516, 7
    %v611 = vmul.f32 %v600, %v607
    %v612 = vmul.f32 %v602, %v608
    %615 = vrot.lane.b32.xlu0 %v603, 32
    %v616 = vpop.permute.xlu0 %615
    %617 = vrot.lane.b32.xlu0 %v604, 32
    %v618 = vpop.permute.xlu0 %617
    %v621 = vmul.f32 %v600, %v616
    %v622 = vmul.f32 %v602, %v618
    %625 = vrot.lane.b32.xlu0 %v621, 32
    %v626 = vpop.permute.xlu0 %625
    %627 = vrot.lane.b32.xlu0 %v622, 32
    %v628 = vpop.permute.xlu0 %627
    %v631 = vadd.f32 %v611, %v626
    %v632 = vadd.f32 %v612, %v628
    %v633 = vtanh.pop %v631
    %v634 = vtanh.pop %v632
    %637 = vrot.lane.b32.xlu0 %v633, 32
    %v638 = vpop.permute.xlu0 %637
    %639 = vrot.lane.b32.xlu0 %v634, 32
    %v640 = vpop.permute.xlu0 %639
    %v643 = vmul.f32 %v600, %v638
    %v644 = vmul.f32 %v602, %v640
    %v645 = vpack.c.bf16 %v643, %v643
    %v646 = vpack.c.bf16 %v644, %v644
    %v649 = vunpack.c.l.b16 %v645
    %v650 = vunpack.c.l.b16 %v646
    %v651 = vrot.slane %v649, 3
    %v652 = vrot.slane %v650, 2
    %v653 = vsel %vm306, %v652, %v651
    %v654 = vpack.c.b16 %v653, %v653
    %655 = vrot.lane.b32.xlu0 %v654, 64
    %v656 = vpop.permute.xlu0 %655
    %v658 = vsel %vm134, %v656, 0
    %660 = vmatprep.subr.bf16.mxu0 0
    %661 = vmatpush1.bf16.msra.mxu0 0
    %662 = vmatprep.subr.bf16.mxu0 0
    %663 = vmatpush1.bf16.msra.mxu0 0
    %664 = vmatprep.subr.bf16.mxu0 0
    %665 = vmatpush1.bf16.msra.mxu0 0
    %666 = vmatprep.subr.bf16.mxu0 0
    %667 = vmatpush1.bf16.msra.mxu0 0
    %668 = vmatprep.subr.bf16.mxu0 0
    %669 = vmatpush1.bf16.msra.mxu0 0
    %670 = vmatprep.subr.bf16.mxu0 0
    %671 = vmatpush1.bf16.msra.mxu0 0
    %672 = vmatprep.subr.bf16.mxu0 0
    %673 = vmatpush1.bf16.msra.mxu0 %v191
    %674 = vmatprep.subr.bf16.mxu0 0
    %675 = vmatpush1.bf16.msra.mxu0 %v190
    %676 = vmatprep.subr.bf16.mxu0 0
    %677 = vmatpush2.bf16.msra.mxu0 0
    %678 = vmatprep.subr.bf16.mxu0 0
    %679 = vmatpush2.bf16.msra.mxu0 0
    %680 = vmatprep.subr.bf16.mxu0 0
    %681 = vmatpush2.bf16.msra.mxu0 0
    %682 = vmatprep.subr.bf16.mxu0 0
    %683 = vmatpush2.bf16.msra.mxu0 0
    %684 = vmatprep.subr.bf16.mxu0 0
    %685 = vmatpush2.bf16.msra.mxu0 0
    %686 = vmatprep.subr.bf16.mxu0 0
    %687 = vmatpush2.bf16.msra.mxu0 0
    %688 = vmatprep.subr.bf16.mxu0 0
    %689 = vmatpush2.bf16.msra.mxu0 0
    %690 = vmatprep.subr.bf16.mxu0 0
    %691 = vmatpush2.bf16.msra.mxu0 0
    %692 = vmatprep.mubr.bf16.mxu0 0
    %693 = vmatmul.mubr.bf16.gmra.mxu0 %v658
    %v694 = vpop.f32.mrf.mxu0
    %v695 = vadd.f32 0.0, %v694
    %v696 = vpop.f32.mrf.mxu0
    %v697 = vpop.f32.mrf.mxu0
    %v698 = vpop.f32.mrf.mxu0
    %699 = vdwg.mxu0
    %v701 = vrot.slane %v695, 4
    %v702 = vrot.slane %v695, 5
    %v705 = vadd.f32 %v173, %v701
    %v706 = vadd.f32 %v176, %v702
    %v707 = vxor.u32 %v705, 2147483648
    %v708 = vxor.u32 %v706, 2147483648
    %v709 = vmul.f32 %v707, 1.442695
    %v710 = vpow.pop %v709
    %v711 = vmul.f32 %v708, 1.442695
    %v712 = vpow.pop %v711
    %v713 = vadd.f32 %v710, 1.0
    %v714 = vadd.f32 %v712, 1.0
    %v715 = vrcp.pop %v713
    %v716 = vmul.f32 1.0, %v715
    %v717 = vrcp.pop %v714
    %v718 = vmul.f32 1.0, %v717
    %v719 = vtanh.pop %v705
    %v720 = vtanh.pop %v706
    %v723 = vrot.slane %v631, 7
    %v724 = vrot.slane %v632, 7
    %v727 = vmul.f32 %v716, %v723
    %v728 = vmul.f32 %v718, %v724
    %731 = vrot.lane.b32.xlu0 %v719, 32
    %v732 = vpop.permute.xlu0 %731
    %733 = vrot.lane.b32.xlu0 %v720, 32
    %v734 = vpop.permute.xlu0 %733
    %v737 = vmul.f32 %v716, %v732
    %v738 = vmul.f32 %v718, %v734
    %741 = vrot.lane.b32.xlu0 %v737, 32
    %v742 = vpop.permute.xlu0 %741
    %743 = vrot.lane.b32.xlu0 %v738, 32
    %v744 = vpop.permute.xlu0 %743
    %v747 = vadd.f32 %v727, %v742
    %v748 = vadd.f32 %v728, %v744
    %v749 = vtanh.pop %v747
    %v750 = vtanh.pop %v748
    %753 = vrot.lane.b32.xlu0 %v749, 32
    %v754 = vpop.permute.xlu0 %753
    %755 = vrot.lane.b32.xlu0 %v750, 32
    %v756 = vpop.permute.xlu0 %755
    %v759 = vmul.f32 %v716, %v754
    %v760 = vmul.f32 %v718, %v756
    %v761 = vpack.c.bf16 %v759, %v759
    %v762 = vpack.c.bf16 %v760, %v760
    %v765 = vunpack.c.l.b16 %v761
    %v766 = vunpack.c.l.b16 %v762
    %v767 = vrot.slane %v765, 4
    %v768 = vrot.slane %v766, 3
    %v769 = vsel %vm306, %v768, %v767
    %v770 = vpack.c.b16 %v769, %v769
    %771 = vrot.lane.b32.xlu0 %v770, 64
    %v772 = vpop.permute.xlu0 %771
    %v774 = vsel %vm134, %v772, 0
    %776 = vmatprep.subr.bf16.mxu0 0
    %777 = vmatpush1.bf16.msra.mxu0 0
    %778 = vmatprep.subr.bf16.mxu0 0
    %779 = vmatpush1.bf16.msra.mxu0 0
    %780 = vmatprep.subr.bf16.mxu0 0
    %781 = vmatpush1.bf16.msra.mxu0 0
    %782 = vmatprep.subr.bf16.mxu0 0
    %783 = vmatpush1.bf16.msra.mxu0 0
    %784 = vmatprep.subr.bf16.mxu0 0
    %785 = vmatpush1.bf16.msra.mxu0 0
    %786 = vmatprep.subr.bf16.mxu0 0
    %787 = vmatpush1.bf16.msra.mxu0 0
    %788 = vmatprep.subr.bf16.mxu0 0
    %789 = vmatpush1.bf16.msra.mxu0 %v191
    %790 = vmatprep.subr.bf16.mxu0 0
    %791 = vmatpush1.bf16.msra.mxu0 %v190
    %792 = vmatprep.subr.bf16.mxu0 0
    %793 = vmatpush2.bf16.msra.mxu0 0
    %794 = vmatprep.subr.bf16.mxu0 0
    %795 = vmatpush2.bf16.msra.mxu0 0
    %796 = vmatprep.subr.bf16.mxu0 0
    %797 = vmatpush2.bf16.msra.mxu0 0
    %798 = vmatprep.subr.bf16.mxu0 0
    %799 = vmatpush2.bf16.msra.mxu0 0
    %800 = vmatprep.subr.bf16.mxu0 0
    %801 = vmatpush2.bf16.msra.mxu0 0
    %802 = vmatprep.subr.bf16.mxu0 0
    %803 = vmatpush2.bf16.msra.mxu0 0
    %804 = vmatprep.subr.bf16.mxu0 0
    %805 = vmatpush2.bf16.msra.mxu0 0
    %806 = vmatprep.subr.bf16.mxu0 0
    %807 = vmatpush2.bf16.msra.mxu0 0
    %808 = vmatprep.mubr.bf16.mxu0 0
    %809 = vmatmul.mubr.bf16.gmra.mxu0 %v774
    %v810 = vpop.f32.mrf.mxu0
    %v811 = vadd.f32 0.0, %v810
    %v812 = vpop.f32.mrf.mxu0
    %v813 = vpop.f32.mrf.mxu0
    %v814 = vpop.f32.mrf.mxu0
    %815 = vdwg.mxu0
    %v817 = vrot.slane %v811, 3
    %v818 = vrot.slane %v811, 4
    %v821 = vadd.f32 %v173, %v817
    %v822 = vadd.f32 %v176, %v818
    %v823 = vxor.u32 %v821, 2147483648
    %v824 = vxor.u32 %v822, 2147483648
    %v825 = vmul.f32 %v823, 1.442695
    %v826 = vpow.pop %v825
    %v827 = vmul.f32 %v824, 1.442695
    %v828 = vpow.pop %v827
    %v829 = vadd.f32 %v826, 1.0
    %v830 = vadd.f32 %v828, 1.0
    %v831 = vrcp.pop %v829
    %v832 = vmul.f32 1.0, %v831
    %v833 = vrcp.pop %v830
    %v834 = vmul.f32 1.0, %v833
    %v835 = vtanh.pop %v821
    %v836 = vtanh.pop %v822
    %v839 = vrot.slane %v747, 7
    %v840 = vrot.slane %v748, 7
    %v843 = vmul.f32 %v832, %v839
    %v844 = vmul.f32 %v834, %v840
    %847 = vrot.lane.b32.xlu0 %v835, 32
    %v848 = vpop.permute.xlu0 %847
    %849 = vrot.lane.b32.xlu0 %v836, 32
    %v850 = vpop.permute.xlu0 %849
    %v853 = vmul.f32 %v832, %v848
    %v854 = vmul.f32 %v834, %v850
    %857 = vrot.lane.b32.xlu0 %v853, 32
    %v858 = vpop.permute.xlu0 %857
    %859 = vrot.lane.b32.xlu0 %v854, 32
    %v860 = vpop.permute.xlu0 %859
    %v863 = vadd.f32 %v843, %v858
    %v864 = vadd.f32 %v844, %v860
    %v865 = vtanh.pop %v863
    %v866 = vtanh.pop %v864
    %869 = vrot.lane.b32.xlu0 %v865, 32
    %v870 = vpop.permute.xlu0 %869
    %871 = vrot.lane.b32.xlu0 %v866, 32
    %v872 = vpop.permute.xlu0 %871
    %v875 = vmul.f32 %v832, %v870
    %v876 = vmul.f32 %v834, %v872
    %v877 = vpack.c.bf16 %v875, %v875
    %v878 = vpack.c.bf16 %v876, %v876
    %v881 = vunpack.c.l.b16 %v877
    %v882 = vunpack.c.l.b16 %v878
    %v883 = vrot.slane %v881, 5
    %v884 = vrot.slane %v882, 4
    %v885 = vsel %vm306, %v884, %v883
    %v886 = vpack.c.b16 %v885, %v885
    %887 = vrot.lane.b32.xlu0 %v886, 64
    %v888 = vpop.permute.xlu0 %887
    %v890 = vsel %vm134, %v888, 0
    %892 = vmatprep.subr.bf16.mxu0 0
    %893 = vmatpush1.bf16.msra.mxu0 0
    %894 = vmatprep.subr.bf16.mxu0 0
    %895 = vmatpush1.bf16.msra.mxu0 0
    %896 = vmatprep.subr.bf16.mxu0 0
    %897 = vmatpush1.bf16.msra.mxu0 0
    %898 = vmatprep.subr.bf16.mxu0 0
    %899 = vmatpush1.bf16.msra.mxu0 0
    %900 = vmatprep.subr.bf16.mxu0 0
    %901 = vmatpush1.bf16.msra.mxu0 0
    %902 = vmatprep.subr.bf16.mxu0 0
    %903 = vmatpush1.bf16.msra.mxu0 0
    %904 = vmatprep.subr.bf16.mxu0 0
    %905 = vmatpush1.bf16.msra.mxu0 %v191
    %906 = vmatprep.subr.bf16.mxu0 0
    %907 = vmatpush1.bf16.msra.mxu0 %v190
    %908 = vmatprep.subr.bf16.mxu0 0
    %909 = vmatpush2.bf16.msra.mxu0 0
    %910 = vmatprep.subr.bf16.mxu0 0
    %911 = vmatpush2.bf16.msra.mxu0 0
    %912 = vmatprep.subr.bf16.mxu0 0
    %913 = vmatpush2.bf16.msra.mxu0 0
    %914 = vmatprep.subr.bf16.mxu0 0
    %915 = vmatpush2.bf16.msra.mxu0 0
    %916 = vmatprep.subr.bf16.mxu0 0
    %917 = vmatpush2.bf16.msra.mxu0 0
    %918 = vmatprep.subr.bf16.mxu0 0
    %919 = vmatpush2.bf16.msra.mxu0 0
    %920 = vmatprep.subr.bf16.mxu0 0
    %921 = vmatpush2.bf16.msra.mxu0 0
    %922 = vmatprep.subr.bf16.mxu0 0
    %923 = vmatpush2.bf16.msra.mxu0 0
    %924 = vmatprep.mubr.bf16.mxu0 0
    %925 = vmatmul.mubr.bf16.gmra.mxu0 %v890
    %v926 = vpop.f32.mrf.mxu0
    %v927 = vadd.f32 0.0, %v926
    %v928 = vpop.f32.mrf.mxu0
    %v929 = vpop.f32.mrf.mxu0
    %v930 = vpop.f32.mrf.mxu0
    %931 = vdwg.mxu0
    %v933 = vrot.slane %v927, 2
    %v934 = vrot.slane %v927, 3
    %v937 = vadd.f32 %v173, %v933
    %v938 = vadd.f32 %v176, %v934
    %v939 = vxor.u32 %v937, 2147483648
    %v940 = vxor.u32 %v938, 2147483648
    %v941 = vmul.f32 %v939, 1.442695
    %v942 = vpow.pop %v941
    %v943 = vmul.f32 %v940, 1.442695
    %v944 = vpow.pop %v943
    %v945 = vadd.f32 %v942, 1.0
    %v946 = vadd.f32 %v944, 1.0
    %v947 = vrcp.pop %v945
    %v948 = vmul.f32 1.0, %v947
    %v949 = vrcp.pop %v946
    %v950 = vmul.f32 1.0, %v949
    %v951 = vtanh.pop %v937
    %v952 = vtanh.pop %v938
    %v955 = vrot.slane %v863, 7
    %v956 = vrot.slane %v864, 7
    %v959 = vmul.f32 %v948, %v955
    %v960 = vmul.f32 %v950, %v956
    %963 = vrot.lane.b32.xlu0 %v951, 32
    %v964 = vpop.permute.xlu0 %963
    %965 = vrot.lane.b32.xlu0 %v952, 32
    %v966 = vpop.permute.xlu0 %965
    %v969 = vmul.f32 %v948, %v964
    %v970 = vmul.f32 %v950, %v966
    %973 = vrot.lane.b32.xlu0 %v969, 32
    %v974 = vpop.permute.xlu0 %973
    %975 = vrot.lane.b32.xlu0 %v970, 32
    %v976 = vpop.permute.xlu0 %975
    %v979 = vadd.f32 %v959, %v974
    %v980 = vadd.f32 %v960, %v976
    %v981 = vtanh.pop %v979
    %v982 = vtanh.pop %v980
    %985 = vrot.lane.b32.xlu0 %v981, 32
    %v986 = vpop.permute.xlu0 %985
    %987 = vrot.lane.b32.xlu0 %v982, 32
    %v988 = vpop.permute.xlu0 %987
    %v991 = vmul.f32 %v948, %v986
    %v992 = vmul.f32 %v950, %v988
    %v993 = vpack.c.bf16 %v991, %v991
    %v994 = vpack.c.bf16 %v992, %v992
    %v997 = vunpack.c.l.b16 %v993
    %v998 = vunpack.c.l.b16 %v994
    %v999 = vrot.slane %v997, 6
    %v1000 = vrot.slane %v998, 5
    %v1001 = vsel %vm306, %v1000, %v999
    %v1002 = vpack.c.b16 %v1001, %v1001
    %1003 = vrot.lane.b32.xlu0 %v1002, 64
    %v1004 = vpop.permute.xlu0 %1003
    %v1006 = vsel %vm134, %v1004, 0
    %1008 = vmatprep.subr.bf16.mxu0 0
    %1009 = vmatpush1.bf16.msra.mxu0 0
    %1010 = vmatprep.subr.bf16.mxu0 0
    %1011 = vmatpush1.bf16.msra.mxu0 0
    %1012 = vmatprep.subr.bf16.mxu0 0
    %1013 = vmatpush1.bf16.msra.mxu0 0
    %1014 = vmatprep.subr.bf16.mxu0 0
    %1015 = vmatpush1.bf16.msra.mxu0 0
    %1016 = vmatprep.subr.bf16.mxu0 0
    %1017 = vmatpush1.bf16.msra.mxu0 0
    %1018 = vmatprep.subr.bf16.mxu0 0
    %1019 = vmatpush1.bf16.msra.mxu0 0
    %1020 = vmatprep.subr.bf16.mxu0 0
    %1021 = vmatpush1.bf16.msra.mxu0 %v191
    %1022 = vmatprep.subr.bf16.mxu0 0
    %1023 = vmatpush1.bf16.msra.mxu0 %v190
    %1024 = vmatprep.subr.bf16.mxu0 0
    %1025 = vmatpush2.bf16.msra.mxu0 0
    %1026 = vmatprep.subr.bf16.mxu0 0
    %1027 = vmatpush2.bf16.msra.mxu0 0
    %1028 = vmatprep.subr.bf16.mxu0 0
    %1029 = vmatpush2.bf16.msra.mxu0 0
    %1030 = vmatprep.subr.bf16.mxu0 0
    %1031 = vmatpush2.bf16.msra.mxu0 0
    %1032 = vmatprep.subr.bf16.mxu0 0
    %1033 = vmatpush2.bf16.msra.mxu0 0
    %1034 = vmatprep.subr.bf16.mxu0 0
    %1035 = vmatpush2.bf16.msra.mxu0 0
    %1036 = vmatprep.subr.bf16.mxu0 0
    %1037 = vmatpush2.bf16.msra.mxu0 0
    %1038 = vmatprep.subr.bf16.mxu0 0
    %1039 = vmatpush2.bf16.msra.mxu0 0
    %1040 = vmatprep.mubr.bf16.mxu0 0
    %1041 = vmatmul.mubr.bf16.gmra.mxu0 %v1006
    %v1042 = vpop.f32.mrf.mxu0
    %v1043 = vadd.f32 0.0, %v1042
    %v1044 = vpop.f32.mrf.mxu0
    %v1045 = vpop.f32.mrf.mxu0
    %v1046 = vpop.f32.mrf.mxu0
    %1047 = vdwg.mxu0
    %v1049 = vrot.slane %v1043, 1
    %v1050 = vrot.slane %v1043, 2
    %v1053 = vadd.f32 %v173, %v1049
    %v1054 = vadd.f32 %v176, %v1050
    %v1055 = vxor.u32 %v1053, 2147483648
    %v1056 = vxor.u32 %v1054, 2147483648
    %v1057 = vmul.f32 %v1055, 1.442695
    %v1058 = vpow.pop %v1057
    %v1059 = vmul.f32 %v1056, 1.442695
    %v1060 = vpow.pop %v1059
    %v1061 = vadd.f32 %v1058, 1.0
    %v1062 = vadd.f32 %v1060, 1.0
    %v1063 = vrcp.pop %v1061
    %v1064 = vmul.f32 1.0, %v1063
    %v1065 = vrcp.pop %v1062
    %v1066 = vmul.f32 1.0, %v1065
    %v1067 = vtanh.pop %v1053
    %v1068 = vtanh.pop %v1054
    %v1071 = vrot.slane %v979, 7
    %v1072 = vrot.slane %v980, 7
    %v1075 = vmul.f32 %v1064, %v1071
    %v1076 = vmul.f32 %v1066, %v1072
    %1079 = vrot.lane.b32.xlu0 %v1067, 32
    %v1080 = vpop.permute.xlu0 %1079
    %1081 = vrot.lane.b32.xlu0 %v1068, 32
    %v1082 = vpop.permute.xlu0 %1081
    %v1085 = vmul.f32 %v1064, %v1080
    %v1086 = vmul.f32 %v1066, %v1082
    %1089 = vrot.lane.b32.xlu0 %v1085, 32
    %v1090 = vpop.permute.xlu0 %1089
    %1091 = vrot.lane.b32.xlu0 %v1086, 32
    %v1092 = vpop.permute.xlu0 %1091
    %v1095 = vadd.f32 %v1075, %v1090
    %v1096 = vadd.f32 %v1076, %v1092
    %v1097 = vtanh.pop %v1095
    %v1098 = vtanh.pop %v1096
    %1101 = vrot.lane.b32.xlu0 %v1097, 32
    %v1102 = vpop.permute.xlu0 %1101
    %1103 = vrot.lane.b32.xlu0 %v1098, 32
    %v1104 = vpop.permute.xlu0 %1103
    %v1107 = vmul.f32 %v1064, %v1102
    %v1108 = vmul.f32 %v1066, %v1104
    %vm1109 = vcmask 1040384
    %v1110 = vsel %vm1109, %v297, %v412
    %v1111 = vsel %vm1109, %v298, %v413
    %vm1112 = vcmask 1041408
    %v1113 = vsel %vm1112, %v1110, %v527
    %v1114 = vsel %vm1112, %v1111, %v528
    %vm1115 = vcmask 1042432
    %v1116 = vsel %vm1115, %v1113, %v643
    %v1117 = vsel %vm1115, %v1114, %v644
    %vm1118 = vcmask 1043456
    %v1119 = vsel %vm1118, %v1116, %v759
    %v1120 = vsel %vm1118, %v1117, %v760
    %vm1121 = vcmask 1044480
    %v1122 = vsel %vm1121, %v1119, %v875
    %v1123 = vsel %vm1121, %v1120, %v876
    %vm1124 = vcmask 1045504
    %v1125 = vsel %vm1124, %v1122, %v991
    %v1126 = vsel %vm1124, %v1123, %v992
    %vm1127 = vcmask 1046528
    %v1128 = vsel %vm1127, %v1125, %v1107
    %v1129 = vsel %vm1127, %v1126, %v1108
    %v1130 = vpack.c.bf16 %v1129, %v1128
    %1132 = vrot.lane.b32.xlu0 %v1130, 64
    %v1133 = vpop.permute.xlu0 %1132
    %v1138 = vunpack.c.l.b16 %v107
    %v1139 = vunpack.c.l.b16 %v108
    %v1140 = vunpack.c.l.b16 %v109
    %v1141 = vunpack.c.l.b16 %v110
    %v1142 = vpack.c.b16 %v1139, %v1138
    %v1143 = vpack.c.b16 %v1141, %v1140
    %v1147 = vsel %vm134, %v1133, 0
    %1149 = vmatprep.subr.bf16.mxu0 0
    %1150 = vmatpush1.bf16.msra.mxu0 0
    %1151 = vmatprep.subr.bf16.mxu0 0
    %1152 = vmatpush1.bf16.msra.mxu0 0
    %1153 = vmatprep.subr.bf16.mxu0 0
    %1154 = vmatpush1.bf16.msra.mxu0 0
    %1155 = vmatprep.subr.bf16.mxu0 0
    %1156 = vmatpush1.bf16.msra.mxu0 0
    %1157 = vmatprep.subr.bf16.mxu0 0
    %1158 = vmatpush1.bf16.msra.mxu0 0
    %1159 = vmatprep.subr.bf16.mxu0 0
    %1160 = vmatpush1.bf16.msra.mxu0 0
    %1161 = vmatprep.subr.bf16.mxu0 0
    %1162 = vmatpush1.bf16.msra.mxu0 %v1143
    %1163 = vmatprep.subr.bf16.mxu0 0
    %1164 = vmatpush1.bf16.msra.mxu0 %v1142
    %1165 = vmatprep.subr.bf16.mxu0 0
    %1166 = vmatpush2.bf16.msra.mxu0 0
    %1167 = vmatprep.subr.bf16.mxu0 0
    %1168 = vmatpush2.bf16.msra.mxu0 0
    %1169 = vmatprep.subr.bf16.mxu0 0
    %1170 = vmatpush2.bf16.msra.mxu0 0
    %1171 = vmatprep.subr.bf16.mxu0 0
    %1172 = vmatpush2.bf16.msra.mxu0 0
    %1173 = vmatprep.subr.bf16.mxu0 0
    %1174 = vmatpush2.bf16.msra.mxu0 0
    %1175 = vmatprep.subr.bf16.mxu0 0
    %1176 = vmatpush2.bf16.msra.mxu0 0
    %1177 = vmatprep.subr.bf16.mxu0 0
    %1178 = vmatpush2.bf16.msra.mxu0 0
    %1179 = vmatprep.subr.bf16.mxu0 0
    %1180 = vmatpush2.bf16.msra.mxu0 0
    %1181 = vmatprep.mubr.bf16.mxu0 0
    %1182 = vmatmul.mubr.bf16.gmra.mxu0 %v1147
    %v1183 = vpop.f32.mrf.mxu0
    %v1184 = vadd.f32 0.0, %v1183
    %v1185 = vpop.f32.mrf.mxu0
    %v1186 = vpop.f32.mrf.mxu0
    %v1187 = vadd.f32 0.0, %v1186
    %v1188 = vpop.f32.mrf.mxu0
    %1189 = vdwg.mxu0
    %v1194 = vunpack.c.l.b16 %v99
    %v1195 = vunpack.c.l.b16 %v100
    %v1196 = vunpack.c.l.b16 %v101
    %v1197 = vunpack.c.l.b16 %v102
    %v1198 = vpack.c.b16 %v1195, %v1194
    %v1199 = vpack.c.b16 %v1197, %v1196
    %1202 = vmatprep.subr.bf16.mxu0 0
    %1203 = vmatpush1.bf16.msra.mxu0 0
    %1204 = vmatprep.subr.bf16.mxu0 0
    %1205 = vmatpush1.bf16.msra.mxu0 0
    %1206 = vmatprep.subr.bf16.mxu0 0
    %1207 = vmatpush1.bf16.msra.mxu0 0
    %1208 = vmatprep.subr.bf16.mxu0 0
    %1209 = vmatpush1.bf16.msra.mxu0 0
    %1210 = vmatprep.subr.bf16.mxu0 0
    %1211 = vmatpush1.bf16.msra.mxu0 0
    %1212 = vmatprep.subr.bf16.mxu0 0
    %1213 = vmatpush1.bf16.msra.mxu0 0
    %1214 = vmatprep.subr.bf16.mxu0 0
    %1215 = vmatpush1.bf16.msra.mxu0 %v1199
    %1216 = vmatprep.subr.bf16.mxu0 0
    %1217 = vmatpush1.bf16.msra.mxu0 %v1198
    %1218 = vmatprep.subr.bf16.mxu0 0
    %1219 = vmatpush2.bf16.msra.mxu0 0
    %1220 = vmatprep.subr.bf16.mxu0 0
    %1221 = vmatpush2.bf16.msra.mxu0 0
    %1222 = vmatprep.subr.bf16.mxu0 0
    %1223 = vmatpush2.bf16.msra.mxu0 0
    %1224 = vmatprep.subr.bf16.mxu0 0
    %1225 = vmatpush2.bf16.msra.mxu0 0
    %1226 = vmatprep.subr.bf16.mxu0 0
    %1227 = vmatpush2.bf16.msra.mxu0 0
    %1228 = vmatprep.subr.bf16.mxu0 0
    %1229 = vmatpush2.bf16.msra.mxu0 0
    %1230 = vmatprep.subr.bf16.mxu0 0
    %1231 = vmatpush2.bf16.msra.mxu0 0
    %1232 = vmatprep.subr.bf16.mxu0 0
    %1233 = vmatpush2.bf16.msra.mxu0 0
    %1234 = vmatprep.mubr.bf16.mxu0 0
    %1235 = vmatmul.mubr.bf16.gmra.mxu0 %v1147
    %v1236 = vpop.f32.mrf.mxu0
    %v1237 = vadd.f32 0.0, %v1236
    %v1238 = vpop.f32.mrf.mxu0
    %v1239 = vpop.f32.mrf.mxu0
    %v1240 = vadd.f32 0.0, %v1239
    %v1241 = vpop.f32.mrf.mxu0
    %1242 = vdwg.mxu0
    %v1243 = vpack.c.bf16 %v1237, %v1237
    %v1244 = vpack.c.bf16 %v1240, %v1240
    %v1247 = vlaneseq
    %v1248 = vshrl.u32 %v1247, 7
    %v1249 = vsub.s32 0, %v1248
    %v1250 = vrot.slane %v88, %v1249
    %v1251 = vlaneseq
    %v1252 = vshrl.u32 %v1251, 7
    %v1253 = vsub.s32 0, %v1252
    %v1254 = vrot.slane %v89, %v1253
    %v1261 = vunpack.c.l.b16 %v80
    %v1262 = vunpack.c.l.b16 %v81
    %v1263 = vunpack.c.l.b16 %v82
    %v1264 = vunpack.c.l.b16 %v83
    %v1265 = vpack.c.b16 %v1262, %v1261
    %v1266 = vpack.c.b16 %v1264, %v1263
    %v1270 = vsel %vm134, %v1243, 0
    %1272 = vmatprep.subr.bf16.mxu0 0
    %1273 = vmatpush1.bf16.msra.mxu0 0
    %1274 = vmatprep.subr.bf16.mxu0 0
    %1275 = vmatpush1.bf16.msra.mxu0 0
    %1276 = vmatprep.subr.bf16.mxu0 0
    %1277 = vmatpush1.bf16.msra.mxu0 0
    %1278 = vmatprep.subr.bf16.mxu0 0
    %1279 = vmatpush1.bf16.msra.mxu0 0
    %1280 = vmatprep.subr.bf16.mxu0 0
    %1281 = vmatpush1.bf16.msra.mxu0 0
    %1282 = vmatprep.subr.bf16.mxu0 0
    %1283 = vmatpush1.bf16.msra.mxu0 0
    %1284 = vmatprep.subr.bf16.mxu0 0
    %1285 = vmatpush1.bf16.msra.mxu0 %v1266
    %1286 = vmatprep.subr.bf16.mxu0 0
    %1287 = vmatpush1.bf16.msra.mxu0 %v1265
    %1288 = vmatprep.subr.bf16.mxu0 0
    %1289 = vmatpush2.bf16.msra.mxu0 0
    %1290 = vmatprep.subr.bf16.mxu0 0
    %1291 = vmatpush2.bf16.msra.mxu0 0
    %1292 = vmatprep.subr.bf16.mxu0 0
    %1293 = vmatpush2.bf16.msra.mxu0 0
    %1294 = vmatprep.subr.bf16.mxu0 0
    %1295 = vmatpush2.bf16.msra.mxu0 0
    %1296 = vmatprep.subr.bf16.mxu0 0
    %1297 = vmatpush2.bf16.msra.mxu0 0
    %1298 = vmatprep.subr.bf16.mxu0 0
    %1299 = vmatpush2.bf16.msra.mxu0 0
    %1300 = vmatprep.subr.bf16.mxu0 0
    %1301 = vmatpush2.bf16.msra.mxu0 0
    %1302 = vmatprep.subr.bf16.mxu0 0
    %1303 = vmatpush2.bf16.msra.mxu0 0
    %1304 = vmatprep.mubr.bf16.mxu0 0
    %1305 = vmatmul.mubr.bf16.gmra.mxu0 %v1270
    %v1306 = vpop.f32.mrf.mxu0
    %v1307 = vadd.f32 %v1250, %v1306
    %v1308 = vpop.f32.mrf.mxu0
    %v1309 = vpop.f32.mrf.mxu0
    %v1310 = vpop.f32.mrf.mxu0
    %1311 = vdwg.mxu0
    %v1316 = vunpack.c.l.b16 %v84
    %v1317 = vunpack.c.l.b16 %v85
    %v1318 = vunpack.c.l.b16 %v86
    %v1319 = vunpack.c.l.b16 %v87
    %v1320 = vpack.c.b16 %v1317, %v1316
    %v1321 = vpack.c.b16 %v1319, %v1318
    %v1325 = vsel %vm134, %v1244, 0
    %1327 = vmatprep.subr.bf16.mxu0 0
    %1328 = vmatpush1.bf16.msra.mxu0 0
    %1329 = vmatprep.subr.bf16.mxu0 0
    %1330 = vmatpush1.bf16.msra.mxu0 0
    %1331 = vmatprep.subr.bf16.mxu0 0
    %1332 = vmatpush1.bf16.msra.mxu0 0
    %1333 = vmatprep.subr.bf16.mxu0 0
    %1334 = vmatpush1.bf16.msra.mxu0 0
    %1335 = vmatprep.subr.bf16.mxu0 0
    %1336 = vmatpush1.bf16.msra.mxu0 0
    %1337 = vmatprep.subr.bf16.mxu0 0
    %1338 = vmatpush1.bf16.msra.mxu0 0
    %1339 = vmatprep.subr.bf16.mxu0 0
    %1340 = vmatpush1.bf16.msra.mxu0 %v1321
    %1341 = vmatprep.subr.bf16.mxu0 0
    %1342 = vmatpush1.bf16.msra.mxu0 %v1320
    %1343 = vmatprep.subr.bf16.mxu0 0
    %1344 = vmatpush2.bf16.msra.mxu0 0
    %1345 = vmatprep.subr.bf16.mxu0 0
    %1346 = vmatpush2.bf16.msra.mxu0 0
    %1347 = vmatprep.subr.bf16.mxu0 0
    %1348 = vmatpush2.bf16.msra.mxu0 0
    %1349 = vmatprep.subr.bf16.mxu0 0
    %1350 = vmatpush2.bf16.msra.mxu0 0
    %1351 = vmatprep.subr.bf16.mxu0 0
    %1352 = vmatpush2.bf16.msra.mxu0 0
    %1353 = vmatprep.subr.bf16.mxu0 0
    %1354 = vmatpush2.bf16.msra.mxu0 0
    %1355 = vmatprep.subr.bf16.mxu0 0
    %1356 = vmatpush2.bf16.msra.mxu0 0
    %1357 = vmatprep.subr.bf16.mxu0 0
    %1358 = vmatpush2.bf16.msra.mxu0 0
    %1359 = vmatprep.mubr.bf16.mxu0 0
    %1360 = vmatmul.mubr.bf16.gmra.mxu0 %v1325
    %v1361 = vpop.f32.mrf.mxu0
    %v1362 = vadd.f32 %v1254, %v1361
    %v1363 = vpop.f32.mrf.mxu0
    %v1364 = vpop.f32.mrf.mxu0
    %v1365 = vpop.f32.mrf.mxu0
    %1366 = vdwg.mxu0
    %1367 = vmax.xlane.f32.xlu0 %v1307
    %v1368 = vpop.xlane.xlu0 %1367
    %1369 = vmax.xlane.f32.xlu0 %v1362
    %v1370 = vpop.xlane.xlu0 %1369
    %v1371 = vsub.f32 %v1307, %v1368
    %v1372 = vsub.f32 %v1362, %v1370
    %v1373 = vmul.f32 %v1371, 1.442695
    %v1374 = vpow.pop %v1373
    %v1375 = vmul.f32 %v1372, 1.442695
    %v1376 = vpow.pop %v1375
    %1377 = vadd.xlane.f32.xlu0 %v1374
    %v1378 = vpop.xlane.xlu0 %1377
    %1379 = vadd.xlane.f32.xlu0 %v1376
    %v1380 = vpop.xlane.xlu0 %1379
    %v1381 = vrcp.pop %v1378
    %v1382 = vrcp.pop %v1380
    %v1383 = vmul.f32 %v1374, %v1381
    %v1384 = vmul.f32 %v1376, %v1382
    %v1385 = vpack.c.bf16 %v1383, %v1383
    %v1386 = vpack.c.bf16 %v1384, %v1384
    %v1403 = vunpack.c.l.b16 %v48
    %v1404 = vunpack.c.l.b16 %v49
    %v1405 = vunpack.c.l.b16 %v50
    %v1406 = vunpack.c.l.b16 %v51
    %v1407 = vunpack.c.l.b16 %v52
    %v1408 = vunpack.c.l.b16 %v53
    %v1409 = vunpack.c.l.b16 %v54
    %v1410 = vunpack.c.l.b16 %v55
    %v1411 = vunpack.c.l.b16 %v56
    %v1412 = vunpack.c.l.b16 %v57
    %v1413 = vunpack.c.l.b16 %v58
    %v1414 = vunpack.c.l.b16 %v59
    %v1415 = vunpack.c.l.b16 %v60
    %v1416 = vunpack.c.l.b16 %v61
    %v1417 = vunpack.c.l.b16 %v62
    %v1418 = vunpack.c.l.b16 %v63
    %v1419 = vpack.c.b16 %v1404, %v1403
    %v1420 = vpack.c.b16 %v1406, %v1405
    %v1421 = vpack.c.b16 %v1408, %v1407
    %v1422 = vpack.c.b16 %v1410, %v1409
    %v1423 = vpack.c.b16 %v1412, %v1411
    %v1424 = vpack.c.b16 %v1414, %v1413
    %v1425 = vpack.c.b16 %v1416, %v1415
    %v1426 = vpack.c.b16 %v1418, %v1417
    %1435 = vmatprep.subr.bf16.mxu0 0
    %1436 = vmatpush1.bf16.msra.mxu0 %v1426
    %1437 = vmatprep.subr.bf16.mxu0 0
    %1438 = vmatpush1.bf16.msra.mxu0 %v1425
    %1439 = vmatprep.subr.bf16.mxu0 0
    %1440 = vmatpush1.bf16.msra.mxu0 %v1424
    %1441 = vmatprep.subr.bf16.mxu0 0
    %1442 = vmatpush1.bf16.msra.mxu0 %v1423
    %1443 = vmatprep.subr.bf16.mxu0 0
    %1444 = vmatpush1.bf16.msra.mxu0 %v1422
    %1445 = vmatprep.subr.bf16.mxu0 0
    %1446 = vmatpush1.bf16.msra.mxu0 %v1421
    %1447 = vmatprep.subr.bf16.mxu0 0
    %1448 = vmatpush1.bf16.msra.mxu0 %v1420
    %1449 = vmatprep.subr.bf16.mxu0 0
    %1450 = vmatpush1.bf16.msra.mxu0 %v1419
    %1451 = vmatprep.subr.bf16.mxu0 0
    %1452 = vmatpush2.bf16.msra.mxu0 0
    %1453 = vmatprep.subr.bf16.mxu0 0
    %1454 = vmatpush2.bf16.msra.mxu0 0
    %1455 = vmatprep.subr.bf16.mxu0 0
    %1456 = vmatpush2.bf16.msra.mxu0 0
    %1457 = vmatprep.subr.bf16.mxu0 0
    %1458 = vmatpush2.bf16.msra.mxu0 0
    %1459 = vmatprep.subr.bf16.mxu0 0
    %1460 = vmatpush2.bf16.msra.mxu0 0
    %1461 = vmatprep.subr.bf16.mxu0 0
    %1462 = vmatpush2.bf16.msra.mxu0 0
    %1463 = vmatprep.subr.bf16.mxu0 0
    %1464 = vmatpush2.bf16.msra.mxu0 0
    %1465 = vmatprep.subr.bf16.mxu0 0
    %1466 = vmatpush2.bf16.msra.mxu0 0
    %1467 = vmatprep.mubr.bf16.mxu0 0
    %1468 = vmatmul.mubr.bf16.gmra.mxu0 %v1385
    %v1469 = vpop.f32.mrf.mxu0
    %v1470 = vadd.f32 0.0, %v1469
    %v1471 = vpop.f32.mrf.mxu0
    %v1472 = vpop.f32.mrf.mxu0
    %v1473 = vpop.f32.mrf.mxu0
    %1474 = vdwg.mxu0
    %v1491 = vunpack.c.l.b16 %v64
    %v1492 = vunpack.c.l.b16 %v65
    %v1493 = vunpack.c.l.b16 %v66
    %v1494 = vunpack.c.l.b16 %v67
    %v1495 = vunpack.c.l.b16 %v68
    %v1496 = vunpack.c.l.b16 %v69
    %v1497 = vunpack.c.l.b16 %v70
    %v1498 = vunpack.c.l.b16 %v71
    %v1499 = vunpack.c.l.b16 %v72
    %v1500 = vunpack.c.l.b16 %v73
    %v1501 = vunpack.c.l.b16 %v74
    %v1502 = vunpack.c.l.b16 %v75
    %v1503 = vunpack.c.l.b16 %v76
    %v1504 = vunpack.c.l.b16 %v77
    %v1505 = vunpack.c.l.b16 %v78
    %v1506 = vunpack.c.l.b16 %v79
    %v1507 = vpack.c.b16 %v1492, %v1491
    %v1508 = vpack.c.b16 %v1494, %v1493
    %v1509 = vpack.c.b16 %v1496, %v1495
    %v1510 = vpack.c.b16 %v1498, %v1497
    %v1511 = vpack.c.b16 %v1500, %v1499
    %v1512 = vpack.c.b16 %v1502, %v1501
    %v1513 = vpack.c.b16 %v1504, %v1503
    %v1514 = vpack.c.b16 %v1506, %v1505
    %1523 = vmatprep.subr.bf16.mxu0 0
    %1524 = vmatpush1.bf16.msra.mxu0 %v1514
    %1525 = vmatprep.subr.bf16.mxu0 0
    %1526 = vmatpush1.bf16.msra.mxu0 %v1513
    %1527 = vmatprep.subr.bf16.mxu0 0
    %1528 = vmatpush1.bf16.msra.mxu0 %v1512
    %1529 = vmatprep.subr.bf16.mxu0 0
    %1530 = vmatpush1.bf16.msra.mxu0 %v1511
    %1531 = vmatprep.subr.bf16.mxu0 0
    %1532 = vmatpush1.bf16.msra.mxu0 %v1510
    %1533 = vmatprep.subr.bf16.mxu0 0
    %1534 = vmatpush1.bf16.msra.mxu0 %v1509
    %1535 = vmatprep.subr.bf16.mxu0 0
    %1536 = vmatpush1.bf16.msra.mxu0 %v1508
    %1537 = vmatprep.subr.bf16.mxu0 0
    %1538 = vmatpush1.bf16.msra.mxu0 %v1507
    %1539 = vmatprep.subr.bf16.mxu0 0
    %1540 = vmatpush2.bf16.msra.mxu0 0
    %1541 = vmatprep.subr.bf16.mxu0 0
    %1542 = vmatpush2.bf16.msra.mxu0 0
    %1543 = vmatprep.subr.bf16.mxu0 0
    %1544 = vmatpush2.bf16.msra.mxu0 0
    %1545 = vmatprep.subr.bf16.mxu0 0
    %1546 = vmatpush2.bf16.msra.mxu0 0
    %1547 = vmatprep.subr.bf16.mxu0 0
    %1548 = vmatpush2.bf16.msra.mxu0 0
    %1549 = vmatprep.subr.bf16.mxu0 0
    %1550 = vmatpush2.bf16.msra.mxu0 0
    %1551 = vmatprep.subr.bf16.mxu0 0
    %1552 = vmatpush2.bf16.msra.mxu0 0
    %1553 = vmatprep.subr.bf16.mxu0 0
    %1554 = vmatpush2.bf16.msra.mxu0 0
    %1555 = vmatprep.mubr.bf16.mxu0 0
    %1556 = vmatmul.mubr.bf16.gmra.mxu0 %v1386
    %v1557 = vpop.f32.mrf.mxu0
    %v1558 = vadd.f32 0.0, %v1557
    %v1559 = vpop.f32.mrf.mxu0
    %v1560 = vpop.f32.mrf.mxu0
    %v1561 = vpop.f32.mrf.mxu0
    %1562 = vdwg.mxu0
    %v1563 = vpack.c.bf16 %v1558, %v1470
    %v1568 = vunpack.c.l.b16 %v103
    %v1569 = vunpack.c.l.b16 %v104
    %v1570 = vunpack.c.l.b16 %v105
    %v1571 = vunpack.c.l.b16 %v106
    %v1572 = vpack.c.b16 %v1569, %v1568
    %v1573 = vpack.c.b16 %v1571, %v1570
    %v1577 = vsel %vm134, %v1563, 0
    %1579 = vmatprep.subr.bf16.mxu0 0
    %1580 = vmatpush1.bf16.msra.mxu0 0
    %1581 = vmatprep.subr.bf16.mxu0 0
    %1582 = vmatpush1.bf16.msra.mxu0 0
    %1583 = vmatprep.subr.bf16.mxu0 0
    %1584 = vmatpush1.bf16.msra.mxu0 0
    %1585 = vmatprep.subr.bf16.mxu0 0
    %1586 = vmatpush1.bf16.msra.mxu0 0
    %1587 = vmatprep.subr.bf16.mxu0 0
    %1588 = vmatpush1.bf16.msra.mxu0 0
    %1589 = vmatprep.subr.bf16.mxu0 0
    %1590 = vmatpush1.bf16.msra.mxu0 0
    %1591 = vmatprep.subr.bf16.mxu0 0
    %1592 = vmatpush1.bf16.msra.mxu0 %v1573
    %1593 = vmatprep.subr.bf16.mxu0 0
    %1594 = vmatpush1.bf16.msra.mxu0 %v1572
    %1595 = vmatprep.subr.bf16.mxu0 0
    %1596 = vmatpush2.bf16.msra.mxu0 0
    %1597 = vmatprep.subr.bf16.mxu0 0
    %1598 = vmatpush2.bf16.msra.mxu0 0
    %1599 = vmatprep.subr.bf16.mxu0 0
    %1600 = vmatpush2.bf16.msra.mxu0 0
    %1601 = vmatprep.subr.bf16.mxu0 0
    %1602 = vmatpush2.bf16.msra.mxu0 0
    %1603 = vmatprep.subr.bf16.mxu0 0
    %1604 = vmatpush2.bf16.msra.mxu0 0
    %1605 = vmatprep.subr.bf16.mxu0 0
    %1606 = vmatpush2.bf16.msra.mxu0 0
    %1607 = vmatprep.subr.bf16.mxu0 0
    %1608 = vmatpush2.bf16.msra.mxu0 0
    %1609 = vmatprep.subr.bf16.mxu0 0
    %1610 = vmatpush2.bf16.msra.mxu0 0
    %1611 = vmatprep.mubr.bf16.mxu0 0
    %1612 = vmatmul.mubr.bf16.gmra.mxu0 %v1577
    %v1613 = vpop.f32.mrf.mxu0
    %v1614 = vadd.f32 %v1184, %v1613
    %v1615 = vpop.f32.mrf.mxu0
    %v1616 = vpop.f32.mrf.mxu0
    %v1617 = vadd.f32 %v1187, %v1616
    %v1618 = vpop.f32.mrf.mxu0
    %1619 = vdwg.mxu0
    %v1620 = vtanh.pop %v1614
    %v1621 = vtanh.pop %v1617
    %v1622 = vsel %vm134, %v1620, 0.0
    %v1623 = vsel %vm134, %v1621, 0.0
    %1624 = vst [vmem:[#allocation2] sm:$0xff] %v1622
    %1625 = vst [vmem:[#allocation2 + $0x8] sm:$0xff] %v1623
    %1626 = vst [vmem:[#allocation4] sm:$0xff] %v1383
    %1627 = vst [vmem:[#allocation4 + $0x8] sm:$0xff] %v1384
    // Predicated region
    $region50: #{tpu_custom_call.1} parent=1 // pred_check
      _
    $region51: #{tpu_custom_call.1} parent=1 // pred_check_branch
      %1629 = sbr.rel (0) target = $region53
    $region52: #{tpu_custom_call.1} parent=1 // pred_region
      %s1631 = ssub.s32 256, 256
      %1632 = vsyncadd [#allocation3], %s1631
      %s1633 = sshll.u32 [#allocation2], 4
      %s1634 = int_to_ptr.vmem [resolvable:$true] %s1633
      %1639 = dma.vmem_to_hbm [thread:$0]  %s1634, 256, %s12, [#allocation3], 128, 128, 8
    $region53: #{tpu_custom_call.1} parent=1 // pred_fallthru
      _
    // Predicated region
    $region54: #{tpu_custom_call.1} parent=1 // pred_check
      _
    $region55: #{tpu_custom_call.1} parent=1 // pred_check_branch
      %1641 = sbr.rel (0) target = $region57
    $region56: #{tpu_custom_call.1} parent=1 // pred_region
      %s1643 = ssub.s32 256, 256
      %1644 = vsyncadd [#allocation5], %s1643
      %s1645 = sshll.u32 [#allocation4], 4
      %s1646 = int_to_ptr.vmem [resolvable:$true] %s1645
      %1651 = dma.vmem_to_hbm [thread:$0]  %s1646, 256, %s13, [#allocation5], 128, 128, 8
    $region57: #{tpu_custom_call.1} parent=1 // pred_fallthru
      _
    // Predicated region
    $region58: #{tpu_custom_call.1} parent=1 // pred_check
      _
    $region59: #{tpu_custom_call.1} parent=1 // pred_check_branch
      %1653 = sbr.rel (0) target = $region61
    $region60: #{tpu_custom_call.1} parent=1 // pred_region
      %1654 = dma.done [#allocation3], 256
    $region61: #{tpu_custom_call.1} parent=1 // pred_fallthru
      _
    // Predicated region
    $region62: #{tpu_custom_call.1} parent=1 // pred_check
      _
    $region63: #{tpu_custom_call.1} parent=1 // pred_check_branch
      %1656 = sbr.rel (0) target = $region65
    $region64: #{tpu_custom_call.1} parent=1 // pred_region
      %1657 = dma.done [#allocation5], 256
    $region65: #{tpu_custom_call.1} parent=1 // pred_fallthru
      _
    %1658 = vsyncpa [#allocation3], 1
    %1659 = vsyncpa [#allocation5], 1

</llo_original>
